<compile_context>
chip_gen: v6e
topology: v6e:2x2x1
jax: 0.10.0
libtpu: 0.0.40
codegen_flags: <defaults>
</compile_context>

<pallas_src>
import math
import functools

import jax
import jax.numpy as jnp
from jax.experimental import pallas as pl
from jax.experimental.pallas import tpu as pltpu

# ----------------------- model config (small, TPU-friendly) -----------------
B = 2            # batch
S = 16           # seq len
D = 128          # config.dim
NH = 4           # n_head
NKV = 4          # n_kv_head (== n_head -> repeat_interleave is identity)
HD = D // NH     # head_dim = 32
MULT = 128       # config.multiple_of
EPS = 1e-5
ROPE_BASE = 10000.0
NEG_INF = -1e30

assert D % NH == 0 and HD % 2 == 0
assert NKV == NH, "kernel assumes n_kv_head == n_head (repeat_interleave identity)"


def find_multiple(n, k):
    return n if n % k == 0 else n + k - n % k


HIDDEN = find_multiple(int(2 * (4 * D) / 3), MULT)   # = 384
TOTAL_KV = (NH + 2 * NKV) * HD                       # = 3 * D = 384
BS = B * S                                           # rows per fused block


# ----------------------------- Pallas kernel --------------------------------
def transformer_block_kernel(x_ref, cos_ref, sin_e_ref, sin_o_ref, mask_ref,
                             wqkv_ref, wo_ref, w13_ref, w2_ref,
                             anorm_ref, fnorm_ref, o_ref):
    x = x_ref[...]                        # (BS, D) f32
    cos = cos_ref[...]                    # (BS, D)
    sin_e = sin_e_ref[...]                # (BS, D)  -sin on even lanes, 0 on odd
    sin_o = sin_o_ref[...]                # (BS, D)  +sin on odd lanes, 0 on even
    mask = mask_ref[...]                  # (BS, BS) additive block-diag causal mask

    def rmsnorm(v, w):
        ms = jnp.mean(v * v, axis=-1, keepdims=True)
        return v * jax.lax.rsqrt(ms + EPS) * w

    def rope(v):
        # Pairwise (even, odd) rotation.  Parity/sign are pre-folded into
        # sin_e / sin_o, so the roll wrap-around lanes (0 and D-1) are always
        # multiplied by zero, and pairs never cross head boundaries (HD even).
        width = v.shape[1]
        v_next = pltpu.roll(v, shift=width - 1, axis=1)   # v[j+1]
        v_prev = pltpu.roll(v, shift=1, axis=1)           # v[j-1]
        return v * cos + v_next * sin_e + v_prev * sin_o

    # ---- attention branch ----
    xn = rmsnorm(x, anorm_ref[...])                                    # f32
    qkv = jnp.dot(xn.astype(jnp.bfloat16), wqkv_ref[...],
                  preferred_element_type=jnp.float32)                  # (BS, 3D)
    # 1/sqrt(HD) is already folded into the Q columns of wqkv.
    q = rope(qkv[:, :D]).astype(jnp.bfloat16)
    k = rope(qkv[:, D:2 * D]).astype(jnp.bfloat16)
    v = qkv[:, 2 * D:].astype(jnp.bfloat16)

    nt_dims = (((1,), (1,)), ((), ()))     # q @ k^T without materializing k^T
    heads = []
    for h in range(NH):
        qh = q[:, h * HD:(h + 1) * HD]
        kh = k[:, h * HD:(h + 1) * HD]
        vh = v[:, h * HD:(h + 1) * HD]
        s = jax.lax.dot_general(qh, kh, nt_dims,
                                preferred_element_type=jnp.float32) + mask
        m = jnp.max(s, axis=-1, keepdims=True)
        p = jnp.exp(s - m)
        p = p * pl.reciprocal(jnp.sum(p, axis=-1, keepdims=True), approx=True)
        heads.append(jnp.dot(p.astype(jnp.bfloat16), vh,
                             preferred_element_type=jnp.float32))      # (BS, HD)
    attn = jnp.concatenate(heads, axis=1).astype(jnp.bfloat16)          # (BS, D)
    h_res = x + jnp.dot(attn, wo_ref[...],
                        preferred_element_type=jnp.float32)             # residual 1

    # ---- feed-forward branch (SwiGLU, fused w1|w3) ----
    hn = rmsnorm(h_res, fnorm_ref[...]).astype(jnp.bfloat16)
    gu = jnp.dot(hn, w13_ref[...], preferred_element_type=jnp.float32)  # (BS, 2H)
    g = gu[:, :HIDDEN]
    u = gu[:, HIDDEN:]
    act = (g * jax.nn.sigmoid(g) * u).astype(jnp.bfloat16)              # silu(g)*u
    ffn = jnp.dot(act, w2_ref[...], preferred_element_type=jnp.float32)
    o_ref[...] = (h_res + ffn).astype(o_ref.dtype)                      # residual 2


# ------------------------------ wrapper --------------------------------------
@functools.partial(jax.jit, static_argnames=())
def transformer_block(x, cos_f, sin_e, sin_o, mask_add,
                      wqkv_bf, wo_bf, w13_bf, w2_bf, attn_norm_w, ffn_norm_w):
    x_flat = x.reshape(BS, D)
    full = lambda shape: pl.BlockSpec(shape, lambda i: tuple(0 for _ in shape))
    out = pl.pallas_call(
        transformer_block_kernel,
        out_shape=jax.ShapeDtypeStruct((BS, D), x.dtype),
        grid=(1,),
        in_specs=[
            full((BS, D)),             # x (flattened batch*seq)
            full((BS, D)),             # cos table
            full((BS, D)),             # sin (even-lane, sign-folded)
            full((BS, D)),             # sin (odd-lane)
            full((BS, BS)),            # additive block-diag causal mask
            full((D, TOTAL_KV)),       # wqkv^T (bf16, Q cols pre-scaled)
            full((D, D)),              # wo^T (bf16)
            full((D, 2 * HIDDEN)),     # [w1^T | w3^T] fused (bf16)
            full((HIDDEN, D)),         # w2^T (bf16)
            full((1, D)),              # attention_norm weight (f32)
            full((1, D)),              # ffn_norm weight (f32)
        ],
        out_specs=full((BS, D)),
        compiler_params=pltpu.CompilerParams(
            dimension_semantics=("arbitrary",)),
    )(x_flat, cos_f, sin_e, sin_o, mask_add,
      wqkv_bf, wo_bf, w13_bf, w2_bf, attn_norm_w, ffn_norm_w)
    return out.reshape(B, S, D)


# ----------------------- one-time parameter / table prep ---------------------
def prepare_weights(wqkv_t, wo_t, w1_t, w3_t, w2_t):
    """Fold the attention scale into Q, fuse w1/w3, cast MXU operands to bf16."""
    scale = 1.0 / math.sqrt(HD)
    wqkv_scaled = wqkv_t.at[:, :D].multiply(scale)
    wqkv_bf = wqkv_scaled.astype(jnp.bfloat16)
    wo_bf = wo_t.astype(jnp.bfloat16)
    w13_bf = jnp.concatenate([w1_t, w3_t], axis=1).astype(jnp.bfloat16)
    w2_bf = w2_t.astype(jnp.bfloat16)
    return wqkv_bf, wo_bf, w13_bf, w2_bf


def prepare_tables():
    """RoPE cos/sin tables (parity & sign folded) + block-diag causal mask."""
    inv_freq = 1.0 / (ROPE_BASE ** (jnp.arange(0, HD, 2, dtype=jnp.float32) / HD))
    angles = jnp.arange(S, dtype=jnp.float32)[:, None] * inv_freq[None, :]
    cos_h, sin_h = jnp.cos(angles), jnp.sin(angles)                 # (S, HD//2)

    cos_row = jnp.tile(jnp.repeat(cos_h, 2, axis=-1), (1, NH))      # (S, D)
    sin_row = jnp.tile(jnp.repeat(sin_h, 2, axis=-1), (1, NH))      # (S, D)
    even = (jnp.arange(D) % 2) == 0
    sin_even_row = jnp.where(even[None, :], -sin_row, 0.0)          # mult. roll(v,-1)
    sin_odd_row = jnp.where(even[None, :], 0.0, sin_row)            # mult. roll(v,+1)

    cos_f = jnp.tile(cos_row, (B, 1)).astype(jnp.float32)           # (BS, D)
    sin_e = jnp.tile(sin_even_row, (B, 1)).astype(jnp.float32)
    sin_o = jnp.tile(sin_odd_row, (B, 1)).astype(jnp.float32)

    idx = jnp.arange(BS)
    r, c = idx[:, None], idx[None, :]
    allowed = ((r // S) == (c // S)) & ((c % S) <= (r % S))         # same batch, causal
    mask_add = jnp.where(allowed, 0.0, NEG_INF).astype(jnp.float32)  # (BS, BS)
    return cos_h, sin_h, cos_f, sin_e, sin_o, mask_add


# -------------------------- pure-JAX reference ------------------------------
def ref_block(x, cos_h, sin_h, wqkv_t, wo_t, w1_t, w3_t, w2_t, anw, fnw):
    def rms(v, w):
        ms = jnp.mean(v * v, -1, keepdims=True)
        return v * jax.lax.rsqrt(ms + EPS) * w

    def rope(t):  # t: (B, S, NH, HD)
        tr = t.reshape(B, S, NH, HD // 2, 2)
        c = cos_h[None, :, None, :]
        s = sin_h[None, :, None, :]
        o0 = tr[..., 0] * c - tr[..., 1] * s
        o1 = tr[..., 1] * c + tr[..., 0] * s
        return jnp.stack([o0, o1], -1).reshape(B, S, NH, HD)

    xn = rms(x, anw[0])
    qkv = xn @ wqkv_t
    q = rope(qkv[..., :D].reshape(B, S, NH, HD))
    k = rope(qkv[..., D:2 * D].reshape(B, S, NH, HD))
    v = qkv[..., 2 * D:].reshape(B, S, NH, HD)
    scores = jnp.einsum("bqhd,bkhd->bhqk", q, k) / math.sqrt(HD)
    causal = jnp.tril(jnp.ones((S, S), bool))
    scores = jnp.where(causal[None, None], scores, NEG_INF)
    p = jax.nn.softmax(scores, axis=-1)
    o = jnp.einsum("bhqk,bkhd->bqhd", p, v).reshape(B, S, D)
    h = x + o @ wo_t
    hn = rms(h, fnw[0])
    ffn = (jax.nn.silu(hn @ w1_t) * (hn @ w3_t)) @ w2_t
    return h + ffn


# --------------------------------- main --------------------------------------
if __name__ == "__main__":
    key = jax.random.PRNGKey(0)
    ks = jax.random.split(key, 8)
    init = 0.02

    x = jax.random.normal(ks[0], (B, S, D), jnp.float32)
    # weights stored as (in, out) = PyTorch weight.T
    wqkv_t = init * jax.random.normal(ks[1], (D, TOTAL_KV), jnp.float32)
    wo_t = init * jax.random.normal(ks[2], (D, D), jnp.float32)
    w1_t = init * jax.random.normal(ks[3], (D, HIDDEN), jnp.float32)
    w3_t = init * jax.random.normal(ks[4], (D, HIDDEN), jnp.float32)
    w2_t = init * jax.random.normal(ks[5], (HIDDEN, D), jnp.float32)
    attn_norm_w = jnp.ones((1, D), jnp.float32)
    ffn_norm_w = jnp.ones((1, D), jnp.float32)

    # one-time param / table preparation (scale & parity folding, bf16 cast)
    wqkv_bf, wo_bf, w13_bf, w2_bf = prepare_weights(wqkv_t, wo_t, w1_t, w3_t, w2_t)
    cos_h, sin_h, cos_f, sin_e, sin_o, mask_add = prepare_tables()

    out = transformer_block(x, cos_f, sin_e, sin_o, mask_add,
                            wqkv_bf, wo_bf, w13_bf, w2_bf,
                            attn_norm_w, ffn_norm_w)
    out = jax.block_until_ready(out)

    ref = ref_block(x, cos_h, sin_h, wqkv_t, wo_t, w1_t, w3_t, w2_t,
                    attn_norm_w, ffn_norm_w)
    assert out.shape == (B, S, D)
    # tolerance accounts for bf16 MXU operands + approx reciprocal in softmax
    assert jnp.allclose(out, ref, rtol=1e-2, atol=1e-2), "mismatch vs reference"

    print("KERNEL_OK")
</pallas_src>

<mosaic_0001>
module attributes {stable_mosaic.version = 11 : i64} {
  func.func @transformer_block_kernel(%arg0: i32, %arg1: memref<32x128xf32, #tpu.memory_space<vmem>>, %arg2: memref<32x128xf32, #tpu.memory_space<vmem>>, %arg3: memref<32x128xf32, #tpu.memory_space<vmem>>, %arg4: memref<32x128xf32, #tpu.memory_space<vmem>>, %arg5: memref<32x32xf32, #tpu.memory_space<vmem>>, %arg6: memref<128x384xbf16, #tpu.memory_space<vmem>>, %arg7: memref<128x128xbf16, #tpu.memory_space<vmem>>, %arg8: memref<128x768xbf16, #tpu.memory_space<vmem>>, %arg9: memref<384x128xbf16, #tpu.memory_space<vmem>>, %arg10: memref<1x128xf32, #tpu.memory_space<vmem>>, %arg11: memref<1x128xf32, #tpu.memory_space<vmem>>, %arg12: memref<32x128xf32, #tpu.memory_space<vmem>>) attributes {dimension_semantics = [#tpu.dimension_semantics<arbitrary>], iteration_bounds = array<i64: 1>, scalar_prefetch = 0 : i64, scratch_operands = 0 : i64, tpu.core_type = #tpu.core_type<tc>, window_params = [{pipeline_mode = #tpu.pipeline_mode<synchronous>, transform_indices = @transform_0, window_bounds = array<i64: 32, 128>}, {pipeline_mode = #tpu.pipeline_mode<synchronous>, transform_indices = @transform_1, window_bounds = array<i64: 32, 128>}, {pipeline_mode = #tpu.pipeline_mode<synchronous>, transform_indices = @transform_2, window_bounds = array<i64: 32, 128>}, {pipeline_mode = #tpu.pipeline_mode<synchronous>, transform_indices = @transform_3, window_bounds = array<i64: 32, 128>}, {pipeline_mode = #tpu.pipeline_mode<synchronous>, transform_indices = @transform_4, window_bounds = array<i64: 32, 32>}, {pipeline_mode = #tpu.pipeline_mode<synchronous>, transform_indices = @transform_5, window_bounds = array<i64: 128, 384>}, {pipeline_mode = #tpu.pipeline_mode<synchronous>, transform_indices = @transform_6, window_bounds = array<i64: 128, 128>}, {pipeline_mode = #tpu.pipeline_mode<synchronous>, transform_indices = @transform_7, window_bounds = array<i64: 128, 768>}, {pipeline_mode = #tpu.pipeline_mode<synchronous>, transform_indices = @transform_8, window_bounds = array<i64: 384, 128>}, {pipeline_mode = #tpu.pipeline_mode<synchronous>, transform_indices = @transform_9, window_bounds = array<i64: 1, 128>}, {pipeline_mode = #tpu.pipeline_mode<synchronous>, transform_indices = @transform_10, window_bounds = array<i64: 1, 128>}, {pipeline_mode = #tpu.pipeline_mode<synchronous>, transform_indices = @transform_11, window_bounds = array<i64: 32, 128>}]} {
    %c0 = arith.constant 0 : index
    %c0_0 = arith.constant 0 : index
    %0 = vector.load %arg1[%c0, %c0_0] : memref<32x128xf32, #tpu.memory_space<vmem>>, vector<32x128xf32>
    %c0_1 = arith.constant 0 : index
    %c0_2 = arith.constant 0 : index
    %1 = vector.load %arg2[%c0_1, %c0_2] : memref<32x128xf32, #tpu.memory_space<vmem>>, vector<32x128xf32>
    %c0_3 = arith.constant 0 : index
    %c0_4 = arith.constant 0 : index
    %2 = vector.load %arg3[%c0_3, %c0_4] : memref<32x128xf32, #tpu.memory_space<vmem>>, vector<32x128xf32>
    %c0_5 = arith.constant 0 : index
    %c0_6 = arith.constant 0 : index
    %3 = vector.load %arg4[%c0_5, %c0_6] : memref<32x128xf32, #tpu.memory_space<vmem>>, vector<32x128xf32>
    %c0_7 = arith.constant 0 : index
    %c0_8 = arith.constant 0 : index
    %4 = vector.load %arg5[%c0_7, %c0_8] : memref<32x32xf32, #tpu.memory_space<vmem>>, vector<32x32xf32>
    %c0_9 = arith.constant 0 : index
    %c0_10 = arith.constant 0 : index
    %5 = vector.load %arg10[%c0_9, %c0_10] : memref<1x128xf32, #tpu.memory_space<vmem>>, vector<1x128xf32>
    %6 = arith.mulf %0, %0 : vector<32x128xf32>
    %cst = arith.constant dense<0.000000e+00> : vector<32xf32>
    %7 = vector.multi_reduction <add>, %6, %cst [1] : vector<32x128xf32> to vector<32xf32>
    %8 = vector.shape_cast %7 : vector<32xf32> to vector<32x1xf32>
    %cst_11 = arith.constant 1.280000e+02 : f32
    %9 = vector.broadcast %cst_11 : f32 to vector<32x1xf32>
    %10 = arith.divf %8, %9 : vector<32x1xf32>
    %cst_12 = arith.constant 9.99999974E-6 : f32
    %11 = vector.broadcast %cst_12 : f32 to vector<32x1xf32>
    %12 = arith.addf %10, %11 : vector<32x1xf32>
    %13 = math.rsqrt %12 : vector<32x1xf32>
    %14 = vector.broadcast %13 : vector<32x1xf32> to vector<32x128xf32>
    %15 = arith.mulf %0, %14 : vector<32x128xf32>
    %16 = vector.broadcast %5 : vector<1x128xf32> to vector<32x128xf32>
    %17 = arith.mulf %15, %16 : vector<32x128xf32>
    %18 = arith.truncf %17 : vector<32x128xf32> to vector<32x128xbf16>
    %c0_13 = arith.constant 0 : index
    %c0_14 = arith.constant 0 : index
    %19 = vector.load %arg6[%c0_13, %c0_14] : memref<128x384xbf16, #tpu.memory_space<vmem>>, vector<128x384xbf16>
    %cst_15 = arith.constant dense<0.000000e+00> : vector<32x384xf32>
    %20 = tpu.matmul %18, %19, %cst_15 {dimension_numbers = #tpu.dot_dimension_numbers<[1], [0], [0], [1], [0, 0, 1, 1], [], []>} : vector<32x128xbf16>, vector<128x384xbf16>, vector<32x384xf32> -> vector<32x384xf32>
    %21 = vector.extract_strided_slice %20 {offsets = [0, 0], sizes = [32, 128], strides = [1, 1]} : vector<32x384xf32> to vector<32x128xf32>
    %c127_i32 = arith.constant 127 : i32
    %22 = tpu.dynamic_rotate %21 by %c127_i32 dim 1 : vector<32x128xf32>, i32 -> vector<32x128xf32>
    %c1_i32 = arith.constant 1 : i32
    %23 = tpu.dynamic_rotate %21 by %c1_i32 dim 1 : vector<32x128xf32>, i32 -> vector<32x128xf32>
    %24 = arith.mulf %21, %1 : vector<32x128xf32>
    %25 = arith.mulf %22, %2 : vector<32x128xf32>
    %26 = arith.addf %24, %25 : vector<32x128xf32>
    %27 = arith.mulf %23, %3 : vector<32x128xf32>
    %28 = arith.addf %26, %27 : vector<32x128xf32>
    %29 = arith.truncf %28 : vector<32x128xf32> to vector<32x128xbf16>
    %30 = vector.extract_strided_slice %20 {offsets = [0, 128], sizes = [32, 128], strides = [1, 1]} : vector<32x384xf32> to vector<32x128xf32>
    %c127_i32_16 = arith.constant 127 : i32
    %31 = tpu.dynamic_rotate %30 by %c127_i32_16 dim 1 : vector<32x128xf32>, i32 -> vector<32x128xf32>
    %c1_i32_17 = arith.constant 1 : i32
    %32 = tpu.dynamic_rotate %30 by %c1_i32_17 dim 1 : vector<32x128xf32>, i32 -> vector<32x128xf32>
    %33 = arith.mulf %30, %1 : vector<32x128xf32>
    %34 = arith.mulf %31, %2 : vector<32x128xf32>
    %35 = arith.addf %33, %34 : vector<32x128xf32>
    %36 = arith.mulf %32, %3 : vector<32x128xf32>
    %37 = arith.addf %35, %36 : vector<32x128xf32>
    %38 = arith.truncf %37 : vector<32x128xf32> to vector<32x128xbf16>
    %39 = vector.extract_strided_slice %20 {offsets = [0, 256], sizes = [32, 128], strides = [1, 1]} : vector<32x384xf32> to vector<32x128xf32>
    %40 = arith.truncf %39 : vector<32x128xf32> to vector<32x128xbf16>
    %41 = vector.extract_strided_slice %29 {offsets = [0, 0], sizes = [32, 32], strides = [1, 1]} : vector<32x128xbf16> to vector<32x32xbf16>
    %42 = vector.extract_strided_slice %38 {offsets = [0, 0], sizes = [32, 32], strides = [1, 1]} : vector<32x128xbf16> to vector<32x32xbf16>
    %43 = vector.extract_strided_slice %40 {offsets = [0, 0], sizes = [32, 32], strides = [1, 1]} : vector<32x128xbf16> to vector<32x32xbf16>
    %cst_18 = arith.constant dense<0.000000e+00> : vector<32x32xf32>
    %44 = tpu.matmul %41, %42, %cst_18 {dimension_numbers = #tpu.dot_dimension_numbers<[1], [1], [0], [0], [0, 0, 1, 0], [], []>} : vector<32x32xbf16>, vector<32x32xbf16>, vector<32x32xf32> -> vector<32x32xf32>
    %45 = arith.addf %44, %4 : vector<32x32xf32>
    %cst_19 = arith.constant dense<0xFF800000> : vector<32xf32>
    %46 = vector.multi_reduction <maximumf>, %45, %cst_19 [1] : vector<32x32xf32> to vector<32xf32>
    %47 = vector.shape_cast %46 : vector<32xf32> to vector<32x1xf32>
    %48 = vector.broadcast %47 : vector<32x1xf32> to vector<32x32xf32>
    %49 = arith.subf %45, %48 : vector<32x32xf32>
    %50 = math.exp %49 : vector<32x32xf32>
    %cst_20 = arith.constant dense<0.000000e+00> : vector<32xf32>
    %51 = vector.multi_reduction <add>, %50, %cst_20 [1] : vector<32x32xf32> to vector<32xf32>
    %52 = vector.shape_cast %51 : vector<32xf32> to vector<32x1xf32>
    %53 = tpu.reciprocal %52 {approx = true} : vector<32x1xf32> -> vector<32x1xf32>
    %54 = vector.broadcast %53 : vector<32x1xf32> to vector<32x32xf32>
    %55 = arith.mulf %50, %54 : vector<32x32xf32>
    %56 = arith.truncf %55 : vector<32x32xf32> to vector<32x32xbf16>
    %cst_21 = arith.constant dense<0.000000e+00> : vector<32x32xf32>
    %57 = tpu.matmul %56, %43, %cst_21 {dimension_numbers = #tpu.dot_dimension_numbers<[1], [0], [0], [1], [0, 0, 1, 1], [], []>} : vector<32x32xbf16>, vector<32x32xbf16>, vector<32x32xf32> -> vector<32x32xf32>
    %58 = vector.extract_strided_slice %29 {offsets = [0, 32], sizes = [32, 32], strides = [1, 1]} : vector<32x128xbf16> to vector<32x32xbf16>
    %59 = vector.extract_strided_slice %38 {offsets = [0, 32], sizes = [32, 32], strides = [1, 1]} : vector<32x128xbf16> to vector<32x32xbf16>
    %60 = vector.extract_strided_slice %40 {offsets = [0, 32], sizes = [32, 32], strides = [1, 1]} : vector<32x128xbf16> to vector<32x32xbf16>
    %cst_22 = arith.constant dense<0.000000e+00> : vector<32x32xf32>
    %61 = tpu.matmul %58, %59, %cst_22 {dimension_numbers = #tpu.dot_dimension_numbers<[1], [1], [0], [0], [0, 0, 1, 0], [], []>} : vector<32x32xbf16>, vector<32x32xbf16>, vector<32x32xf32> -> vector<32x32xf32>
    %62 = arith.addf %61, %4 : vector<32x32xf32>
    %cst_23 = arith.constant dense<0xFF800000> : vector<32xf32>
    %63 = vector.multi_reduction <maximumf>, %62, %cst_23 [1] : vector<32x32xf32> to vector<32xf32>
    %64 = vector.shape_cast %63 : vector<32xf32> to vector<32x1xf32>
    %65 = vector.broadcast %64 : vector<32x1xf32> to vector<32x32xf32>
    %66 = arith.subf %62, %65 : vector<32x32xf32>
    %67 = math.exp %66 : vector<32x32xf32>
    %cst_24 = arith.constant dense<0.000000e+00> : vector<32xf32>
    %68 = vector.multi_reduction <add>, %67, %cst_24 [1] : vector<32x32xf32> to vector<32xf32>
    %69 = vector.shape_cast %68 : vector<32xf32> to vector<32x1xf32>
    %70 = tpu.reciprocal %69 {approx = true} : vector<32x1xf32> -> vector<32x1xf32>
    %71 = vector.broadcast %70 : vector<32x1xf32> to vector<32x32xf32>
    %72 = arith.mulf %67, %71 : vector<32x32xf32>
    %73 = arith.truncf %72 : vector<32x32xf32> to vector<32x32xbf16>
    %cst_25 = arith.constant dense<0.000000e+00> : vector<32x32xf32>
    %74 = tpu.matmul %73, %60, %cst_25 {dimension_numbers = #tpu.dot_dimension_numbers<[1], [0], [0], [1], [0, 0, 1, 1], [], []>} : vector<32x32xbf16>, vector<32x32xbf16>, vector<32x32xf32> -> vector<32x32xf32>
    %75 = vector.extract_strided_slice %29 {offsets = [0, 64], sizes = [32, 32], strides = [1, 1]} : vector<32x128xbf16> to vector<32x32xbf16>
    %76 = vector.extract_strided_slice %38 {offsets = [0, 64], sizes = [32, 32], strides = [1, 1]} : vector<32x128xbf16> to vector<32x32xbf16>
    %77 = vector.extract_strided_slice %40 {offsets = [0, 64], sizes = [32, 32], strides = [1, 1]} : vector<32x128xbf16> to vector<32x32xbf16>
    %cst_26 = arith.constant dense<0.000000e+00> : vector<32x32xf32>
    %78 = tpu.matmul %75, %76, %cst_26 {dimension_numbers = #tpu.dot_dimension_numbers<[1], [1], [0], [0], [0, 0, 1, 0], [], []>} : vector<32x32xbf16>, vector<32x32xbf16>, vector<32x32xf32> -> vector<32x32xf32>
    %79 = arith.addf %78, %4 : vector<32x32xf32>
    %cst_27 = arith.constant dense<0xFF800000> : vector<32xf32>
    %80 = vector.multi_reduction <maximumf>, %79, %cst_27 [1] : vector<32x32xf32> to vector<32xf32>
    %81 = vector.shape_cast %80 : vector<32xf32> to vector<32x1xf32>
    %82 = vector.broadcast %81 : vector<32x1xf32> to vector<32x32xf32>
    %83 = arith.subf %79, %82 : vector<32x32xf32>
    %84 = math.exp %83 : vector<32x32xf32>
    %cst_28 = arith.constant dense<0.000000e+00> : vector<32xf32>
    %85 = vector.multi_reduction <add>, %84, %cst_28 [1] : vector<32x32xf32> to vector<32xf32>
    %86 = vector.shape_cast %85 : vector<32xf32> to vector<32x1xf32>
    %87 = tpu.reciprocal %86 {approx = true} : vector<32x1xf32> -> vector<32x1xf32>
    %88 = vector.broadcast %87 : vector<32x1xf32> to vector<32x32xf32>
    %89 = arith.mulf %84, %88 : vector<32x32xf32>
    %90 = arith.truncf %89 : vector<32x32xf32> to vector<32x32xbf16>
    %cst_29 = arith.constant dense<0.000000e+00> : vector<32x32xf32>
    %91 = tpu.matmul %90, %77, %cst_29 {dimension_numbers = #tpu.dot_dimension_numbers<[1], [0], [0], [1], [0, 0, 1, 1], [], []>} : vector<32x32xbf16>, vector<32x32xbf16>, vector<32x32xf32> -> vector<32x32xf32>
    %92 = vector.extract_strided_slice %29 {offsets = [0, 96], sizes = [32, 32], strides = [1, 1]} : vector<32x128xbf16> to vector<32x32xbf16>
    %93 = vector.extract_strided_slice %38 {offsets = [0, 96], sizes = [32, 32], strides = [1, 1]} : vector<32x128xbf16> to vector<32x32xbf16>
    %94 = vector.extract_strided_slice %40 {offsets = [0, 96], sizes = [32, 32], strides = [1, 1]} : vector<32x128xbf16> to vector<32x32xbf16>
    %cst_30 = arith.constant dense<0.000000e+00> : vector<32x32xf32>
    %95 = tpu.matmul %92, %93, %cst_30 {dimension_numbers = #tpu.dot_dimension_numbers<[1], [1], [0], [0], [0, 0, 1, 0], [], []>} : vector<32x32xbf16>, vector<32x32xbf16>, vector<32x32xf32> -> vector<32x32xf32>
    %96 = arith.addf %95, %4 : vector<32x32xf32>
    %cst_31 = arith.constant dense<0xFF800000> : vector<32xf32>
    %97 = vector.multi_reduction <maximumf>, %96, %cst_31 [1] : vector<32x32xf32> to vector<32xf32>
    %98 = vector.shape_cast %97 : vector<32xf32> to vector<32x1xf32>
    %99 = vector.broadcast %98 : vector<32x1xf32> to vector<32x32xf32>
    %100 = arith.subf %96, %99 : vector<32x32xf32>
    %101 = math.exp %100 : vector<32x32xf32>
    %cst_32 = arith.constant dense<0.000000e+00> : vector<32xf32>
    %102 = vector.multi_reduction <add>, %101, %cst_32 [1] : vector<32x32xf32> to vector<32xf32>
    %103 = vector.shape_cast %102 : vector<32xf32> to vector<32x1xf32>
    %104 = tpu.reciprocal %103 {approx = true} : vector<32x1xf32> -> vector<32x1xf32>
    %105 = vector.broadcast %104 : vector<32x1xf32> to vector<32x32xf32>
    %106 = arith.mulf %101, %105 : vector<32x32xf32>
    %107 = arith.truncf %106 : vector<32x32xf32> to vector<32x32xbf16>
    %cst_33 = arith.constant dense<0.000000e+00> : vector<32x32xf32>
    %108 = tpu.matmul %107, %94, %cst_33 {dimension_numbers = #tpu.dot_dimension_numbers<[1], [0], [0], [1], [0, 0, 1, 1], [], []>} : vector<32x32xbf16>, vector<32x32xbf16>, vector<32x32xf32> -> vector<32x32xf32>
    %109 = tpu.concatenate %57, %74, %91, %108 in 1 : vector<32x32xf32>, vector<32x32xf32>, vector<32x32xf32>, vector<32x32xf32> -> vector<32x128xf32>
    %110 = arith.truncf %109 : vector<32x128xf32> to vector<32x128xbf16>
    %c0_34 = arith.constant 0 : index
    %c0_35 = arith.constant 0 : index
    %111 = vector.load %arg7[%c0_34, %c0_35] : memref<128x128xbf16, #tpu.memory_space<vmem>>, vector<128x128xbf16>
    %cst_36 = arith.constant dense<0.000000e+00> : vector<32x128xf32>
    %112 = tpu.matmul %110, %111, %cst_36 {dimension_numbers = #tpu.dot_dimension_numbers<[1], [0], [0], [1], [0, 0, 1, 1], [], []>} : vector<32x128xbf16>, vector<128x128xbf16>, vector<32x128xf32> -> vector<32x128xf32>
    %113 = arith.addf %0, %112 : vector<32x128xf32>
    %c0_37 = arith.constant 0 : index
    %c0_38 = arith.constant 0 : index
    %114 = vector.load %arg11[%c0_37, %c0_38] : memref<1x128xf32, #tpu.memory_space<vmem>>, vector<1x128xf32>
    %115 = arith.mulf %113, %113 : vector<32x128xf32>
    %cst_39 = arith.constant dense<0.000000e+00> : vector<32xf32>
    %116 = vector.multi_reduction <add>, %115, %cst_39 [1] : vector<32x128xf32> to vector<32xf32>
    %117 = vector.shape_cast %116 : vector<32xf32> to vector<32x1xf32>
    %cst_40 = arith.constant 1.280000e+02 : f32
    %118 = vector.broadcast %cst_40 : f32 to vector<32x1xf32>
    %119 = arith.divf %117, %118 : vector<32x1xf32>
    %cst_41 = arith.constant 9.99999974E-6 : f32
    %120 = vector.broadcast %cst_41 : f32 to vector<32x1xf32>
    %121 = arith.addf %119, %120 : vector<32x1xf32>
    %122 = math.rsqrt %121 : vector<32x1xf32>
    %123 = vector.broadcast %122 : vector<32x1xf32> to vector<32x128xf32>
    %124 = arith.mulf %113, %123 : vector<32x128xf32>
    %125 = vector.broadcast %114 : vector<1x128xf32> to vector<32x128xf32>
    %126 = arith.mulf %124, %125 : vector<32x128xf32>
    %127 = arith.truncf %126 : vector<32x128xf32> to vector<32x128xbf16>
    %c0_42 = arith.constant 0 : index
    %c0_43 = arith.constant 0 : index
    %128 = vector.load %arg8[%c0_42, %c0_43] : memref<128x768xbf16, #tpu.memory_space<vmem>>, vector<128x768xbf16>
    %cst_44 = arith.constant dense<0.000000e+00> : vector<32x768xf32>
    %129 = tpu.matmul %127, %128, %cst_44 {dimension_numbers = #tpu.dot_dimension_numbers<[1], [0], [0], [1], [0, 0, 1, 1], [], []>} : vector<32x128xbf16>, vector<128x768xbf16>, vector<32x768xf32> -> vector<32x768xf32>
    %130 = vector.extract_strided_slice %129 {offsets = [0, 0], sizes = [32, 384], strides = [1, 1]} : vector<32x768xf32> to vector<32x384xf32>
    %131 = vector.extract_strided_slice %129 {offsets = [0, 384], sizes = [32, 384], strides = [1, 1]} : vector<32x768xf32> to vector<32x384xf32>
    %132 = arith.negf %130 : vector<32x384xf32>
    %133 = math.exp %132 : vector<32x384xf32>
    %cst_45 = arith.constant 1.000000e+00 : f32
    %134 = vector.broadcast %cst_45 : f32 to vector<32x384xf32>
    %135 = arith.addf %134, %133 : vector<32x384xf32>
    %136 = arith.divf %134, %135 : vector<32x384xf32>
    %137 = arith.mulf %130, %136 : vector<32x384xf32>
    %138 = arith.mulf %137, %131 : vector<32x384xf32>
    %139 = arith.truncf %138 : vector<32x384xf32> to vector<32x384xbf16>
    %c0_46 = arith.constant 0 : index
    %c0_47 = arith.constant 0 : index
    %140 = vector.load %arg9[%c0_46, %c0_47] : memref<384x128xbf16, #tpu.memory_space<vmem>>, vector<384x128xbf16>
    %cst_48 = arith.constant dense<0.000000e+00> : vector<32x128xf32>
    %141 = tpu.matmul %139, %140, %cst_48 {dimension_numbers = #tpu.dot_dimension_numbers<[1], [0], [0], [1], [0, 0, 1, 1], [], []>} : vector<32x384xbf16>, vector<384x128xbf16>, vector<32x128xf32> -> vector<32x128xf32>
    %142 = arith.addf %113, %141 : vector<32x128xf32>
    %c0_49 = arith.constant 0 : index
    %c0_50 = arith.constant 0 : index
    %143 = vector.load %arg12[%c0_49, %c0_50] : memref<32x128xf32, #tpu.memory_space<vmem>>, vector<32x128xf32>
    tpu.vector_store %arg12[%c0_49, %c0_50], %142 {strides = array<i32>} : memref<32x128xf32, #tpu.memory_space<vmem>>, vector<32x128xf32>,
    return
  }
  func.func @transform_0(%arg0: i32) -> (i32, i32) {
    %c0_i32 = arith.constant 0 : i32
    %c0_i32_0 = arith.constant 0 : i32
    %c0_i32_1 = arith.constant 0 : i32
    return %c0_i32, %c0_i32_0 : i32, i32
  }
  func.func @transform_1(%arg0: i32) -> (i32, i32) {
    %c0_i32 = arith.constant 0 : i32
    %c0_i32_0 = arith.constant 0 : i32
    %c0_i32_1 = arith.constant 0 : i32
    return %c0_i32, %c0_i32_0 : i32, i32
  }
  func.func @transform_2(%arg0: i32) -> (i32, i32) {
    %c0_i32 = arith.constant 0 : i32
    %c0_i32_0 = arith.constant 0 : i32
    %c0_i32_1 = arith.constant 0 : i32
    return %c0_i32, %c0_i32_0 : i32, i32
  }
  func.func @transform_3(%arg0: i32) -> (i32, i32) {
    %c0_i32 = arith.constant 0 : i32
    %c0_i32_0 = arith.constant 0 : i32
    %c0_i32_1 = arith.constant 0 : i32
    return %c0_i32, %c0_i32_0 : i32, i32
  }
  func.func @transform_4(%arg0: i32) -> (i32, i32) {
    %c0_i32 = arith.constant 0 : i32
    %c0_i32_0 = arith.constant 0 : i32
    %c0_i32_1 = arith.constant 0 : i32
    return %c0_i32, %c0_i32_0 : i32, i32
  }
  func.func @transform_5(%arg0: i32) -> (i32, i32) {
    %c0_i32 = arith.constant 0 : i32
    %c0_i32_0 = arith.constant 0 : i32
    %c0_i32_1 = arith.constant 0 : i32
    return %c0_i32, %c0_i32_0 : i32, i32
  }
  func.func @transform_6(%arg0: i32) -> (i32, i32) {
    %c0_i32 = arith.constant 0 : i32
    %c0_i32_0 = arith.constant 0 : i32
    %c0_i32_1 = arith.constant 0 : i32
    return %c0_i32, %c0_i32_0 : i32, i32
  }
  func.func @transform_7(%arg0: i32) -> (i32, i32) {
    %c0_i32 = arith.constant 0 : i32
    %c0_i32_0 = arith.constant 0 : i32
    %c0_i32_1 = arith.constant 0 : i32
    return %c0_i32, %c0_i32_0 : i32, i32
  }
  func.func @transform_8(%arg0: i32) -> (i32, i32) {
    %c0_i32 = arith.constant 0 : i32
    %c0_i32_0 = arith.constant 0 : i32
    %c0_i32_1 = arith.constant 0 : i32
    return %c0_i32, %c0_i32_0 : i32, i32
  }
  func.func @transform_9(%arg0: i32) -> (i32, i32) {
    %c0_i32 = arith.constant 0 : i32
    %c0_i32_0 = arith.constant 0 : i32
    %c0_i32_1 = arith.constant 0 : i32
    return %c0_i32, %c0_i32_0 : i32, i32
  }
  func.func @transform_10(%arg0: i32) -> (i32, i32) {
    %c0_i32 = arith.constant 0 : i32
    %c0_i32_0 = arith.constant 0 : i32
    %c0_i32_1 = arith.constant 0 : i32
    return %c0_i32, %c0_i32_0 : i32, i32
  }
  func.func @transform_11(%arg0: i32) -> (i32, i32) {
    %c0_i32 = arith.constant 0 : i32
    %c0_i32_0 = arith.constant 0 : i32
    %c0_i32_1 = arith.constant 0 : i32
    return %c0_i32, %c0_i32_0 : i32, i32
  }
}

</mosaic_0001>

<llo_original>
// kernel: transformer_block.1
$region0: #{transformer_block.1}
  #allocation0 [shape = 'u32[]', space=smem, size = 0x4, offset = 0x4, fixed_abs, tag = 'smem constant byte address 0x4 - core index']
  #allocation1 [shape = 'u32[144,128]{1,0:T(1,128)}', space=vmem, size = 0x12000, scoped, tag = 'internal scratch']
  %s0 = inlined_call_operand.hbm [shape: f32[32,128], index: 0, kind: input, shape index: {}]
  %s1 = inlined_call_operand.hbm [shape: f32[32,128], index: 1, kind: input, shape index: {}]
  %s2 = inlined_call_operand.hbm [shape: f32[32,128], index: 2, kind: input, shape index: {}]
  %s3 = inlined_call_operand.hbm [shape: f32[32,128], index: 3, kind: input, shape index: {}]
  %s4 = inlined_call_operand.hbm [shape: f32[32,32], index: 4, kind: input, shape index: {}]
  %s5 = inlined_call_operand.hbm [shape: bf16[128,384], index: 5, kind: input, shape index: {}]
  %s6 = inlined_call_operand.hbm [shape: bf16[128,128], index: 6, kind: input, shape index: {}]
  %s7 = inlined_call_operand.hbm [shape: bf16[128,768], index: 7, kind: input, shape index: {}]
  %s8 = inlined_call_operand.hbm [shape: bf16[384,128], index: 8, kind: input, shape index: {}]
  %s9 = inlined_call_operand.vmem [shape: f32[1,128], index: 9, kind: input, shape index: {}]
  %s10 = inlined_call_operand.vmem [shape: f32[1,128], index: 10, kind: input, shape index: {}]
  %s11 = inlined_call_operand.hbm [shape: f32[32,128], index: 11, kind: output, shape index: {}]
  %s12 = sld [smem:[#allocation0]]
  $region90: #{transformer_block.1} parent=0
    _
  %s14 = ssub.s32 1, %s12
  %s15 = scalar_select 0, %s14, %s12
  $region1: #{transformer_block.1} parent=0
    #allocation2 [shape = 'u8[16384]{0}', space=vmem, size = 0x4000, scoped, tag = 'input window, operand 0, single buffered']
    #allocation3 [shape = 's32[1]{0}', space=sflag, size = 0x4, scoped, tag = 'scoped memory for transformer_block.1']
    #allocation4 [shape = 's32[1]{0}', space=sflag, size = 0x4, scoped, tag = 'scoped memory for transformer_block.1']
    #allocation5 [shape = 'u8[16384]{0}', space=vmem, size = 0x4000, scoped, tag = 'input window, operand 1, single buffered']
    #allocation6 [shape = 's32[1]{0}', space=sflag, size = 0x4, scoped, tag = 'scoped memory for transformer_block.1']
    #allocation7 [shape = 'u8[16384]{0}', space=vmem, size = 0x4000, scoped, tag = 'input window, operand 2, single buffered']
    #allocation8 [shape = 'u8[16384]{0}', space=vmem, size = 0x4000, scoped, tag = 'input window, operand 3, single buffered']
    #allocation9 [shape = 's32[1]{0}', space=sflag, size = 0x4, scoped, tag = 'scoped memory for transformer_block.1']
    #allocation10 [shape = 'u8[16384]{0}', space=vmem, size = 0x4000, scoped, tag = 'input window, operand 4, single buffered']
    #allocation11 [shape = 'u8[98304]{0}', space=vmem, size = 0x18000, scoped, tag = 'input window, operand 5, single buffered']
    #allocation12 [shape = 's32[1]{0}', space=sflag, size = 0x4, scoped, tag = 'scoped memory for transformer_block.1']
    #allocation13 [shape = 'u8[32768]{0}', space=vmem, size = 0x8000, scoped, tag = 'input window, operand 6, single buffered']
    #allocation14 [shape = 'u8[196608]{0}', space=vmem, size = 0x30000, scoped, tag = 'input window, operand 7, single buffered']
    #allocation15 [shape = 's32[1]{0}', space=sflag, size = 0x4, scoped, tag = 'scoped memory for transformer_block.1']
    #allocation16 [shape = 'u8[98304]{0}', space=vmem, size = 0x18000, scoped, tag = 'input window, operand 8, single buffered']
    #allocation17 [shape = 'u8[16384]{0}', space=vmem, size = 0x4000, scoped, tag = 'output window, operand 0, single buffered']
    %16 = vsyncpa [#allocation3], 0
    %17 = vsyncpa [#allocation6], 0
    %18 = vsyncpa [#allocation9], 0
    %19 = vsyncpa [#allocation12], 0
    %20 = vsyncpa [#allocation15], 0
    %21 = vsyncpa [#allocation4], 0
    // Predicated region
    $region2: #{transformer_block.1} parent=1 // pred_check
      _
    $region3: #{transformer_block.1} parent=1 // pred_check_branch
      %23 = sbr.rel (0) target = $region5
    $region4: #{transformer_block.1} parent=1 // pred_region
      %s25 = ssub.s32 512, 512
      %26 = vsyncadd [#allocation3], %s25
      %s27 = sshll.u32 [#allocation2], 4
      %s28 = int_to_ptr.vmem [resolvable:$true] %s27
      %33 = dma.hbm_to_vmem [thread:$0]  %s0, 512, %s28, [#allocation3], 128, 128, 8
    $region5: #{transformer_block.1} parent=1 // pred_fallthru
      _
    // Predicated region
    $region6: #{transformer_block.1} parent=1 // pred_check
      _
    $region7: #{transformer_block.1} parent=1 // pred_check_branch
      %35 = sbr.rel (0) target = $region9
    $region8: #{transformer_block.1} parent=1 // pred_region
      %s37 = ssub.s32 512, 512
      %38 = vsyncadd [#allocation6], %s37
      %s39 = sshll.u32 [#allocation5], 4
      %s40 = int_to_ptr.vmem [resolvable:$true] %s39
      %45 = dma.hbm_to_vmem [thread:$0]  %s1, 512, %s40, [#allocation6], 128, 128, 8
    $region9: #{transformer_block.1} parent=1 // pred_fallthru
      _
    // Predicated region
    $region10: #{transformer_block.1} parent=1 // pred_check
      _
    $region11: #{transformer_block.1} parent=1 // pred_check_branch
      %47 = sbr.rel (0) target = $region13
    $region12: #{transformer_block.1} parent=1 // pred_region
      %s49 = ssub.s32 512, 512
      %50 = vsyncadd [#allocation6], %s49
      %s51 = sshll.u32 [#allocation7], 4
      %s52 = int_to_ptr.vmem [resolvable:$true] %s51
      %57 = dma.hbm_to_vmem [thread:$0]  %s2, 512, %s52, [#allocation6], 128, 128, 8
    $region13: #{transformer_block.1} parent=1 // pred_fallthru
      _
    // Predicated region
    $region14: #{transformer_block.1} parent=1 // pred_check
      _
    $region15: #{transformer_block.1} parent=1 // pred_check_branch
      %59 = sbr.rel (0) target = $region17
    $region16: #{transformer_block.1} parent=1 // pred_region
      %s61 = ssub.s32 512, 512
      %62 = vsyncadd [#allocation9], %s61
      %s63 = sshll.u32 [#allocation8], 4
      %s64 = int_to_ptr.vmem [resolvable:$true] %s63
      %69 = dma.hbm_to_vmem [thread:$0]  %s3, 512, %s64, [#allocation9], 128, 128, 8
    $region17: #{transformer_block.1} parent=1 // pred_fallthru
      _
    // Predicated region
    $region18: #{transformer_block.1} parent=1 // pred_check
      _
    $region19: #{transformer_block.1} parent=1 // pred_check_branch
      %71 = sbr.rel (0) target = $region21
    $region20: #{transformer_block.1} parent=1 // pred_region
      %s73 = ssub.s32 512, 512
      %74 = vsyncadd [#allocation9], %s73
      %s75 = sshll.u32 [#allocation10], 4
      %s76 = int_to_ptr.vmem [resolvable:$true] %s75
      %81 = dma.hbm_to_vmem [thread:$0]  %s4, 512, %s76, [#allocation9], 128, 128, 8
    $region21: #{transformer_block.1} parent=1 // pred_fallthru
      _
    // Predicated region
    $region22: #{transformer_block.1} parent=1 // pred_check
      _
    $region23: #{transformer_block.1} parent=1 // pred_check_branch
      %83 = sbr.rel (0) target = $region25
    $region24: #{transformer_block.1} parent=1 // pred_region
      %s85 = ssub.s32 3072, 3072
      %86 = vsyncadd [#allocation12], %s85
      %s87 = sshll.u32 [#allocation11], 4
      %s88 = int_to_ptr.vmem [resolvable:$true] %s87
      %93 = dma.hbm_to_vmem [thread:$0]  %s5, 3072, %s88, [#allocation12], 192, 192, 12
    $region25: #{transformer_block.1} parent=1 // pred_fallthru
      _
    // Predicated region
    $region26: #{transformer_block.1} parent=1 // pred_check
      _
    $region27: #{transformer_block.1} parent=1 // pred_check_branch
      %95 = sbr.rel (0) target = $region29
    $region28: #{transformer_block.1} parent=1 // pred_region
      %s97 = ssub.s32 1024, 1024
      %98 = vsyncadd [#allocation12], %s97
      %s99 = sshll.u32 [#allocation13], 4
      %s100 = int_to_ptr.vmem [resolvable:$true] %s99
      %105 = dma.hbm_to_vmem [thread:$0]  %s6, 1024, %s100, [#allocation12], 64, 64, 4
    $region29: #{transformer_block.1} parent=1 // pred_fallthru
      _
    // Predicated region
    $region30: #{transformer_block.1} parent=1 // pred_check
      _
    $region31: #{transformer_block.1} parent=1 // pred_check_branch
      %107 = sbr.rel (0) target = $region33
    $region32: #{transformer_block.1} parent=1 // pred_region
      %s109 = ssub.s32 6144, 6144
      %110 = vsyncadd [#allocation15], %s109
      %s111 = sshll.u32 [#allocation14], 4
      %s112 = int_to_ptr.vmem [resolvable:$true] %s111
      %117 = dma.hbm_to_vmem [thread:$0]  %s7, 6144, %s112, [#allocation15], 384, 384, 24
    $region33: #{transformer_block.1} parent=1 // pred_fallthru
      _
    // Predicated region
    $region34: #{transformer_block.1} parent=1 // pred_check
      _
    $region35: #{transformer_block.1} parent=1 // pred_check_branch
      %119 = sbr.rel (0) target = $region37
    $region36: #{transformer_block.1} parent=1 // pred_region
      %s121 = ssub.s32 3072, 3072
      %122 = vsyncadd [#allocation15], %s121
      %s123 = sshll.u32 [#allocation16], 4
      %s124 = int_to_ptr.vmem [resolvable:$true] %s123
      %129 = dma.hbm_to_vmem [thread:$0]  %s8, 3072, %s124, [#allocation15], 64, 64, 4
    $region37: #{transformer_block.1} parent=1 // pred_fallthru
      _
    // Predicated region
    $region38: #{transformer_block.1} parent=1 // pred_check
      _
    $region39: #{transformer_block.1} parent=1 // pred_check_branch
      %131 = sbr.rel (0) target = $region41
    $region40: #{transformer_block.1} parent=1 // pred_region
      _
    $region41: #{transformer_block.1} parent=1 // pred_fallthru
      _
    // Predicated region
    $region42: #{transformer_block.1} parent=1 // pred_check
      _
    $region43: #{transformer_block.1} parent=1 // pred_check_branch
      %133 = sbr.rel (0) target = $region45
    $region44: #{transformer_block.1} parent=1 // pred_region
      _
    $region45: #{transformer_block.1} parent=1 // pred_fallthru
      _
    // Predicated region
    $region46: #{transformer_block.1} parent=1 // pred_check
      _
    $region47: #{transformer_block.1} parent=1 // pred_check_branch
      %135 = sbr.rel (0) target = $region49
    $region48: #{transformer_block.1} parent=1 // pred_region
      %136 = dma.done [#allocation3], 512
    $region49: #{transformer_block.1} parent=1 // pred_fallthru
      _
    // Predicated region
    $region50: #{transformer_block.1} parent=1 // pred_check
      _
    $region51: #{transformer_block.1} parent=1 // pred_check_branch
      %138 = sbr.rel (0) target = $region53
    $region52: #{transformer_block.1} parent=1 // pred_region
      %139 = dma.done [#allocation6], 512
    $region53: #{transformer_block.1} parent=1 // pred_fallthru
      _
    // Predicated region
    $region54: #{transformer_block.1} parent=1 // pred_check
      _
    $region55: #{transformer_block.1} parent=1 // pred_check_branch
      %141 = sbr.rel (0) target = $region57
    $region56: #{transformer_block.1} parent=1 // pred_region
      %142 = dma.done [#allocation6], 512
    $region57: #{transformer_block.1} parent=1 // pred_fallthru
      _
    // Predicated region
    $region58: #{transformer_block.1} parent=1 // pred_check
      _
    $region59: #{transformer_block.1} parent=1 // pred_check_branch
      %144 = sbr.rel (0) target = $region61
    $region60: #{transformer_block.1} parent=1 // pred_region
      %145 = dma.done [#allocation9], 512
    $region61: #{transformer_block.1} parent=1 // pred_fallthru
      _
    // Predicated region
    $region62: #{transformer_block.1} parent=1 // pred_check
      _
    $region63: #{transformer_block.1} parent=1 // pred_check_branch
      %147 = sbr.rel (0) target = $region65
    $region64: #{transformer_block.1} parent=1 // pred_region
      %148 = dma.done [#allocation9], 512
    $region65: #{transformer_block.1} parent=1 // pred_fallthru
      _
    // Predicated region
    $region66: #{transformer_block.1} parent=1 // pred_check
      _
    $region67: #{transformer_block.1} parent=1 // pred_check_branch
      %150 = sbr.rel (0) target = $region69
    $region68: #{transformer_block.1} parent=1 // pred_region
      %151 = dma.done [#allocation12], 3072
    $region69: #{transformer_block.1} parent=1 // pred_fallthru
      _
    // Predicated region
    $region70: #{transformer_block.1} parent=1 // pred_check
      _
    $region71: #{transformer_block.1} parent=1 // pred_check_branch
      %153 = sbr.rel (0) target = $region73
    $region72: #{transformer_block.1} parent=1 // pred_region
      %154 = dma.done [#allocation12], 1024
    $region73: #{transformer_block.1} parent=1 // pred_fallthru
      _
    // Predicated region
    $region74: #{transformer_block.1} parent=1 // pred_check
      _
    $region75: #{transformer_block.1} parent=1 // pred_check_branch
      %156 = sbr.rel (0) target = $region77
    $region76: #{transformer_block.1} parent=1 // pred_region
      %157 = dma.done [#allocation15], 6144
    $region77: #{transformer_block.1} parent=1 // pred_fallthru
      _
    // Predicated region
    $region78: #{transformer_block.1} parent=1 // pred_check
      _
    $region79: #{transformer_block.1} parent=1 // pred_check_branch
      %159 = sbr.rel (0) target = $region81
    $region80: #{transformer_block.1} parent=1 // pred_region
      %160 = dma.done [#allocation15], 3072
    $region81: #{transformer_block.1} parent=1 // pred_fallthru
      _
    %v162 = vld [vmem:[#allocation2] sm:$0xff]
    %v163 = vld [vmem:[#allocation2 + $0x8] sm:$0xff]
    %v164 = vld [vmem:[#allocation2 + $0x10] sm:$0xff]
    %v165 = vld [vmem:[#allocation2 + $0x18] sm:$0xff]
    %v166 = vld [vmem:[#allocation5] sm:$0xff]
    %v167 = vld [vmem:[#allocation5 + $0x8] sm:$0xff]
    %v168 = vld [vmem:[#allocation5 + $0x10] sm:$0xff]
    %v169 = vld [vmem:[#allocation5 + $0x18] sm:$0xff]
    %v170 = vld [vmem:[#allocation7] sm:$0xff]
    %v171 = vld [vmem:[#allocation7 + $0x8] sm:$0xff]
    %v172 = vld [vmem:[#allocation7 + $0x10] sm:$0xff]
    %v173 = vld [vmem:[#allocation7 + $0x18] sm:$0xff]
    %v174 = vld [vmem:[#allocation8] sm:$0xff]
    %v175 = vld [vmem:[#allocation8 + $0x8] sm:$0xff]
    %v176 = vld [vmem:[#allocation8 + $0x10] sm:$0xff]
    %v177 = vld [vmem:[#allocation8 + $0x18] sm:$0xff]
    %v178 = vld [vmem:[#allocation10] sm:$0xff]
    %v179 = vld [vmem:[#allocation10 + $0x8] sm:$0xff]
    %v180 = vld [vmem:[#allocation10 + $0x10] sm:$0xff]
    %v181 = vld [vmem:[#allocation10 + $0x18] sm:$0xff]
    %v182 = vld [vmem:[%s9] sm:$0x1]
    %v183 = vmul.f32 %v162, %v162
    %v184 = vmul.f32 %v163, %v163
    %v185 = vmul.f32 %v164, %v164
    %v186 = vmul.f32 %v165, %v165
    %187 = vadd.xlane.f32.xlu0 %v183
    %v188 = vpop.xlane.xlu0 %187
    %189 = vadd.xlane.f32.xlu0 %v184
    %v190 = vpop.xlane.xlu0 %189
    %191 = vadd.xlane.f32.xlu0 %v185
    %v192 = vpop.xlane.xlu0 %191
    %193 = vadd.xlane.f32.xlu0 %v186
    %v194 = vpop.xlane.xlu0 %193
    %v195 = vrcp.pop 128.0
    %v196 = vmul.f32 %v188, %v195
    %v197 = vmul.f32 %v190, %v195
    %v198 = vmul.f32 %v192, %v195
    %v199 = vmul.f32 %v194, %v195
    %v200 = vadd.f32 %v196, 1e-05
    %v201 = vadd.f32 %v197, 1e-05
    %v202 = vadd.f32 %v198, 1e-05
    %v203 = vadd.f32 %v199, 1e-05
    %v204 = vrsqrt.pop %v200
    %v205 = vrsqrt.pop %v201
    %v206 = vrsqrt.pop %v202
    %v207 = vrsqrt.pop %v203
    %v208 = vmul.f32 %v162, %v204
    %v209 = vmul.f32 %v163, %v205
    %v210 = vmul.f32 %v164, %v206
    %v211 = vmul.f32 %v165, %v207
    %v213 = vlaneseq
    %v214 = vshrl.u32 %v213, 7
    %v215 = vsub.s32 0, %v214
    %v216 = vrot.slane %v182, %v215
    %v218 = vmul.f32 %v208, %v216
    %v219 = vmul.f32 %v209, %v216
    %v220 = vmul.f32 %v210, %v216
    %v221 = vmul.f32 %v211, %v216
    %v222 = vpack.c.bf16 %v219, %v218
    %v223 = vpack.c.bf16 %v221, %v220
    %v224 = vld [vmem:[#allocation11] sm:$0xff]
    %v225 = vld [vmem:[#allocation11 + $0x8] sm:$0xf]
    %v226 = vld [vmem:[#allocation11 + $0xc] sm:$0xff]
    %v227 = vld [vmem:[#allocation11 + $0x14] sm:$0xf]
    %v228 = vld [vmem:[#allocation11 + $0x18] sm:$0xff]
    %v229 = vld [vmem:[#allocation11 + $0x20] sm:$0xf]
    %v230 = vld [vmem:[#allocation11 + $0x24] sm:$0xff]
    %v231 = vld [vmem:[#allocation11 + $0x2c] sm:$0xf]
    %v232 = vld [vmem:[#allocation11 + $0x30] sm:$0xff]
    %v233 = vld [vmem:[#allocation11 + $0x38] sm:$0xf]
    %v234 = vld [vmem:[#allocation11 + $0x3c] sm:$0xff]
    %v235 = vld [vmem:[#allocation11 + $0x44] sm:$0xf]
    %v236 = vld [vmem:[#allocation11 + $0x48] sm:$0xff]
    %v237 = vld [vmem:[#allocation11 + $0x50] sm:$0xf]
    %v238 = vld [vmem:[#allocation11 + $0x54] sm:$0xff]
    %v239 = vld [vmem:[#allocation11 + $0x5c] sm:$0xf]
    %v240 = vld [vmem:[#allocation11 + $0x60] sm:$0xff]
    %v241 = vld [vmem:[#allocation11 + $0x68] sm:$0xf]
    %v242 = vld [vmem:[#allocation11 + $0x6c] sm:$0xff]
    %v243 = vld [vmem:[#allocation11 + $0x74] sm:$0xf]
    %v244 = vld [vmem:[#allocation11 + $0x78] sm:$0xff]
    %v245 = vld [vmem:[#allocation11 + $0x80] sm:$0xf]
    %v246 = vld [vmem:[#allocation11 + $0x84] sm:$0xff]
    %v247 = vld [vmem:[#allocation11 + $0x8c] sm:$0xf]
    %v248 = vld [vmem:[#allocation11 + $0x90] sm:$0xff]
    %v249 = vld [vmem:[#allocation11 + $0x98] sm:$0xf]
    %v250 = vld [vmem:[#allocation11 + $0x9c] sm:$0xff]
    %v251 = vld [vmem:[#allocation11 + $0xa4] sm:$0xf]
    %v252 = vld [vmem:[#allocation11 + $0xa8] sm:$0xff]
    %v253 = vld [vmem:[#allocation11 + $0xb0] sm:$0xf]
    %v254 = vld [vmem:[#allocation11 + $0xb4] sm:$0xff]
    %v255 = vld [vmem:[#allocation11 + $0xbc] sm:$0xf]
    %v288 = vunpack.c.l.b16 %v224
    %v289 = vunpack.c.h.b16 %v224
    %v290 = vunpack.c.l.b16 %v225
    %v291 = vunpack.c.l.b16 %v226
    %v292 = vunpack.c.h.b16 %v226
    %v293 = vunpack.c.l.b16 %v227
    %v294 = vunpack.c.l.b16 %v228
    %v295 = vunpack.c.h.b16 %v228
    %v296 = vunpack.c.l.b16 %v229
    %v297 = vunpack.c.l.b16 %v230
    %v298 = vunpack.c.h.b16 %v230
    %v299 = vunpack.c.l.b16 %v231
    %v300 = vunpack.c.l.b16 %v232
    %v301 = vunpack.c.h.b16 %v232
    %v302 = vunpack.c.l.b16 %v233
    %v303 = vunpack.c.l.b16 %v234
    %v304 = vunpack.c.h.b16 %v234
    %v305 = vunpack.c.l.b16 %v235
    %v306 = vunpack.c.l.b16 %v236
    %v307 = vunpack.c.h.b16 %v236
    %v308 = vunpack.c.l.b16 %v237
    %v309 = vunpack.c.l.b16 %v238
    %v310 = vunpack.c.h.b16 %v238
    %v311 = vunpack.c.l.b16 %v239
    %v312 = vunpack.c.l.b16 %v240
    %v313 = vunpack.c.h.b16 %v240
    %v314 = vunpack.c.l.b16 %v241
    %v315 = vunpack.c.l.b16 %v242
    %v316 = vunpack.c.h.b16 %v242
    %v317 = vunpack.c.l.b16 %v243
    %v318 = vunpack.c.l.b16 %v244
    %v319 = vunpack.c.h.b16 %v244
    %v320 = vunpack.c.l.b16 %v245
    %v321 = vunpack.c.l.b16 %v246
    %v322 = vunpack.c.h.b16 %v246
    %v323 = vunpack.c.l.b16 %v247
    %v324 = vunpack.c.l.b16 %v248
    %v325 = vunpack.c.h.b16 %v248
    %v326 = vunpack.c.l.b16 %v249
    %v327 = vunpack.c.l.b16 %v250
    %v328 = vunpack.c.h.b16 %v250
    %v329 = vunpack.c.l.b16 %v251
    %v330 = vunpack.c.l.b16 %v252
    %v331 = vunpack.c.h.b16 %v252
    %v332 = vunpack.c.l.b16 %v253
    %v333 = vunpack.c.l.b16 %v254
    %v334 = vunpack.c.h.b16 %v254
    %v335 = vunpack.c.l.b16 %v255
    %v336 = vpack.c.b16 %v291, %v288
    %v337 = vpack.c.b16 %v292, %v289
    %v338 = vpack.c.b16 %v293, %v290
    %v339 = vpack.c.b16 %v297, %v294
    %v340 = vpack.c.b16 %v298, %v295
    %v341 = vpack.c.b16 %v299, %v296
    %v342 = vpack.c.b16 %v303, %v300
    %v343 = vpack.c.b16 %v304, %v301
    %v344 = vpack.c.b16 %v305, %v302
    %v345 = vpack.c.b16 %v309, %v306
    %v346 = vpack.c.b16 %v310, %v307
    %v347 = vpack.c.b16 %v311, %v308
    %v348 = vpack.c.b16 %v315, %v312
    %v349 = vpack.c.b16 %v316, %v313
    %v350 = vpack.c.b16 %v317, %v314
    %v351 = vpack.c.b16 %v321, %v318
    %v352 = vpack.c.b16 %v322, %v319
    %v353 = vpack.c.b16 %v323, %v320
    %v354 = vpack.c.b16 %v327, %v324
    %v355 = vpack.c.b16 %v328, %v325
    %v356 = vpack.c.b16 %v329, %v326
    %v357 = vpack.c.b16 %v333, %v330
    %v358 = vpack.c.b16 %v334, %v331
    %v359 = vpack.c.b16 %v335, %v332
    %384 = vmatprep.subr.bf16.mxu0 %v358
    %385 = vmatpush1.bf16.msra.mxu0 %v357
    %386 = vmatprep.subr.bf16.mxu0 %v355
    %387 = vmatpush1.bf16.msra.mxu0 %v354
    %388 = vmatprep.subr.bf16.mxu0 %v352
    %389 = vmatpush1.bf16.msra.mxu0 %v351
    %390 = vmatprep.subr.bf16.mxu0 %v349
    %391 = vmatpush1.bf16.msra.mxu0 %v348
    %392 = vmatprep.subr.bf16.mxu0 %v346
    %393 = vmatpush1.bf16.msra.mxu0 %v345
    %394 = vmatprep.subr.bf16.mxu0 %v343
    %395 = vmatpush1.bf16.msra.mxu0 %v342
    %396 = vmatprep.subr.bf16.mxu0 %v340
    %397 = vmatpush1.bf16.msra.mxu0 %v339
    %398 = vmatprep.subr.bf16.mxu0 %v337
    %399 = vmatpush1.bf16.msra.mxu0 %v336
    %400 = vmatprep.subr.bf16.mxu0 0
    %401 = vmatpush2.bf16.msra.mxu0 0
    %402 = vmatprep.subr.bf16.mxu0 0
    %403 = vmatpush2.bf16.msra.mxu0 0
    %404 = vmatprep.subr.bf16.mxu0 0
    %405 = vmatpush2.bf16.msra.mxu0 0
    %406 = vmatprep.subr.bf16.mxu0 0
    %407 = vmatpush2.bf16.msra.mxu0 0
    %408 = vmatprep.subr.bf16.mxu0 0
    %409 = vmatpush2.bf16.msra.mxu0 0
    %410 = vmatprep.subr.bf16.mxu0 0
    %411 = vmatpush2.bf16.msra.mxu0 0
    %412 = vmatprep.subr.bf16.mxu0 0
    %413 = vmatpush2.bf16.msra.mxu0 0
    %414 = vmatprep.subr.bf16.mxu0 0
    %415 = vmatpush2.bf16.msra.mxu0 0
    %416 = vmatprep.mubr.bf16.mxu0 0
    %417 = vmatmul.mubr.bf16.gmra.mxu0 %v222
    %v418 = vpop.f32.mrf.mxu0
    %v419 = vadd.f32 0.0, %v418
    %v420 = vpop.f32.mrf.mxu0
    %v421 = vadd.f32 0.0, %v420
    %v422 = vpop.f32.mrf.mxu0
    %v423 = vadd.f32 0.0, %v422
    %v424 = vpop.f32.mrf.mxu0
    %v425 = vadd.f32 0.0, %v424
    %426 = vmatprep.mubr.bf16.mxu0 0
    %427 = vmatmul.mubr.bf16.gmra.mxu0 %v223
    %v428 = vpop.f32.mrf.mxu0
    %v429 = vadd.f32 0.0, %v428
    %v430 = vpop.f32.mrf.mxu0
    %v431 = vadd.f32 0.0, %v430
    %v432 = vpop.f32.mrf.mxu0
    %v433 = vadd.f32 0.0, %v432
    %v434 = vpop.f32.mrf.mxu0
    %v435 = vadd.f32 0.0, %v434
    %436 = vdwg.mxu0
    %437 = vmatprep.subr.bf16.mxu0 0
    %438 = vmatpush1.bf16.msra.mxu0 %v359
    %439 = vmatprep.subr.bf16.mxu0 0
    %440 = vmatpush1.bf16.msra.mxu0 %v356
    %441 = vmatprep.subr.bf16.mxu0 0
    %442 = vmatpush1.bf16.msra.mxu0 %v353
    %443 = vmatprep.subr.bf16.mxu0 0
    %444 = vmatpush1.bf16.msra.mxu0 %v350
    %445 = vmatprep.subr.bf16.mxu0 0
    %446 = vmatpush1.bf16.msra.mxu0 %v347
    %447 = vmatprep.subr.bf16.mxu0 0
    %448 = vmatpush1.bf16.msra.mxu0 %v344
    %449 = vmatprep.subr.bf16.mxu0 0
    %450 = vmatpush1.bf16.msra.mxu0 %v341
    %451 = vmatprep.subr.bf16.mxu0 0
    %452 = vmatpush1.bf16.msra.mxu0 %v338
    %453 = vmatprep.subr.bf16.mxu0 0
    %454 = vmatpush2.bf16.msra.mxu0 0
    %455 = vmatprep.subr.bf16.mxu0 0
    %456 = vmatpush2.bf16.msra.mxu0 0
    %457 = vmatprep.subr.bf16.mxu0 0
    %458 = vmatpush2.bf16.msra.mxu0 0
    %459 = vmatprep.subr.bf16.mxu0 0
    %460 = vmatpush2.bf16.msra.mxu0 0
    %461 = vmatprep.subr.bf16.mxu0 0
    %462 = vmatpush2.bf16.msra.mxu0 0
    %463 = vmatprep.subr.bf16.mxu0 0
    %464 = vmatpush2.bf16.msra.mxu0 0
    %465 = vmatprep.subr.bf16.mxu0 0
    %466 = vmatpush2.bf16.msra.mxu0 0
    %467 = vmatprep.subr.bf16.mxu0 0
    %468 = vmatpush2.bf16.msra.mxu0 0
    %469 = vmatprep.mubr.bf16.mxu0 0
    %470 = vmatmul.mubr.bf16.gmra.mxu0 %v222
    %v471 = vpop.f32.mrf.mxu0
    %v472 = vadd.f32 0.0, %v471
    %v473 = vpop.f32.mrf.mxu0
    %v474 = vpop.f32.mrf.mxu0
    %v475 = vadd.f32 0.0, %v474
    %v476 = vpop.f32.mrf.mxu0
    %477 = vmatprep.mubr.bf16.mxu0 0
    %478 = vmatmul.mubr.bf16.gmra.mxu0 %v223
    %v479 = vpop.f32.mrf.mxu0
    %v480 = vadd.f32 0.0, %v479
    %v481 = vpop.f32.mrf.mxu0
    %v482 = vpop.f32.mrf.mxu0
    %v483 = vadd.f32 0.0, %v482
    %v484 = vpop.f32.mrf.mxu0
    %485 = vdwg.mxu0
    %486 = vrot.lane.b32.xlu0 %v419, 127
    %v487 = vpop.permute.xlu0 %486
    %488 = vrot.lane.b32.xlu0 %v423, 127
    %v489 = vpop.permute.xlu0 %488
    %490 = vrot.lane.b32.xlu0 %v429, 127
    %v491 = vpop.permute.xlu0 %490
    %492 = vrot.lane.b32.xlu0 %v433, 127
    %v493 = vpop.permute.xlu0 %492
    %494 = vrot.lane.b32.xlu0 %v419, 1
    %v495 = vpop.permute.xlu0 %494
    %496 = vrot.lane.b32.xlu0 %v423, 1
    %v497 = vpop.permute.xlu0 %496
    %498 = vrot.lane.b32.xlu0 %v429, 1
    %v499 = vpop.permute.xlu0 %498
    %500 = vrot.lane.b32.xlu0 %v433, 1
    %v501 = vpop.permute.xlu0 %500
    %v502 = vmul.f32 %v419, %v166
    %v503 = vmul.f32 %v423, %v167
    %v504 = vmul.f32 %v429, %v168
    %v505 = vmul.f32 %v433, %v169
    %v506 = vmul.f32 %v487, %v170
    %v507 = vmul.f32 %v489, %v171
    %v508 = vmul.f32 %v491, %v172
    %v509 = vmul.f32 %v493, %v173
    %v510 = vadd.f32 %v502, %v506
    %v511 = vadd.f32 %v503, %v507
    %v512 = vadd.f32 %v504, %v508
    %v513 = vadd.f32 %v505, %v509
    %v514 = vmul.f32 %v495, %v174
    %v515 = vmul.f32 %v497, %v175
    %v516 = vmul.f32 %v499, %v176
    %v517 = vmul.f32 %v501, %v177
    %v518 = vadd.f32 %v510, %v514
    %v519 = vadd.f32 %v511, %v515
    %v520 = vadd.f32 %v512, %v516
    %v521 = vadd.f32 %v513, %v517
    %v522 = vpack.c.bf16 %v519, %v518
    %v523 = vpack.c.bf16 %v521, %v520
    %524 = vrot.lane.b32.xlu0 %v421, 127
    %v525 = vpop.permute.xlu0 %524
    %526 = vrot.lane.b32.xlu0 %v425, 127
    %v527 = vpop.permute.xlu0 %526
    %528 = vrot.lane.b32.xlu0 %v431, 127
    %v529 = vpop.permute.xlu0 %528
    %530 = vrot.lane.b32.xlu0 %v435, 127
    %v531 = vpop.permute.xlu0 %530
    %532 = vrot.lane.b32.xlu0 %v421, 1
    %v533 = vpop.permute.xlu0 %532
    %534 = vrot.lane.b32.xlu0 %v425, 1
    %v535 = vpop.permute.xlu0 %534
    %536 = vrot.lane.b32.xlu0 %v431, 1
    %v537 = vpop.permute.xlu0 %536
    %538 = vrot.lane.b32.xlu0 %v435, 1
    %v539 = vpop.permute.xlu0 %538
    %v540 = vmul.f32 %v421, %v166
    %v541 = vmul.f32 %v425, %v167
    %v542 = vmul.f32 %v431, %v168
    %v543 = vmul.f32 %v435, %v169
    %v544 = vmul.f32 %v525, %v170
    %v545 = vmul.f32 %v527, %v171
    %v546 = vmul.f32 %v529, %v172
    %v547 = vmul.f32 %v531, %v173
    %v548 = vadd.f32 %v540, %v544
    %v549 = vadd.f32 %v541, %v545
    %v550 = vadd.f32 %v542, %v546
    %v551 = vadd.f32 %v543, %v547
    %v552 = vmul.f32 %v533, %v174
    %v553 = vmul.f32 %v535, %v175
    %v554 = vmul.f32 %v537, %v176
    %v555 = vmul.f32 %v539, %v177
    %v556 = vadd.f32 %v548, %v552
    %v557 = vadd.f32 %v549, %v553
    %v558 = vadd.f32 %v550, %v554
    %v559 = vadd.f32 %v551, %v555
    %v560 = vpack.c.bf16 %v557, %v556
    %v561 = vpack.c.bf16 %v559, %v558
    %v562 = vpack.c.bf16 %v475, %v472
    %v563 = vpack.c.bf16 %v483, %v480
    %vm564 = vcmask 261120
    %v566 = vsel %vm564, %v522, 0
    %v569 = vsel %vm564, %v523, 0
    %v572 = vsel %vm564, %v560, 0
    %v575 = vsel %vm564, %v561, 0
    %577 = vmatprep.subr.bf16.mxu0 0
    %578 = vmatpush1.bf16.xpose.msra.mxu0 0
    %579 = vmatprep.subr.bf16.mxu0 0
    %580 = vmatpush1.bf16.xpose.msra.mxu0 0
    %581 = vmatprep.subr.bf16.mxu0 0
    %582 = vmatpush1.bf16.xpose.msra.mxu0 0
    %583 = vmatprep.subr.bf16.mxu0 0
    %584 = vmatpush1.bf16.xpose.msra.mxu0 0
    %585 = vmatprep.subr.bf16.mxu0 0
    %586 = vmatpush1.bf16.xpose.msra.mxu0 0
    %587 = vmatprep.subr.bf16.mxu0 0
    %588 = vmatpush1.bf16.xpose.msra.mxu0 0
    %589 = vmatprep.subr.bf16.mxu0 0
    %590 = vmatpush1.bf16.xpose.msra.mxu0 %v575
    %591 = vmatprep.subr.bf16.mxu0 0
    %592 = vmatpush1.bf16.xpose.msra.mxu0 %v572
    %593 = vmatprep.subr.bf16.mxu0 0
    %594 = vmatpush2.bf16.xpose.msra.mxu0 0
    %595 = vmatprep.subr.bf16.mxu0 0
    %596 = vmatpush2.bf16.xpose.msra.mxu0 0
    %597 = vmatprep.subr.bf16.mxu0 0
    %598 = vmatpush2.bf16.xpose.msra.mxu0 0
    %599 = vmatprep.subr.bf16.mxu0 0
    %600 = vmatpush2.bf16.xpose.msra.mxu0 0
    %601 = vmatprep.subr.bf16.mxu0 0
    %602 = vmatpush2.bf16.xpose.msra.mxu0 0
    %603 = vmatprep.subr.bf16.mxu0 0
    %604 = vmatpush2.bf16.xpose.msra.mxu0 0
    %605 = vmatprep.subr.bf16.mxu0 0
    %606 = vmatpush2.bf16.xpose.msra.mxu0 0
    %607 = vmatprep.subr.bf16.mxu0 0
    %608 = vmatpush2.bf16.xpose.msra.mxu0 0
    %609 = vmatprep.mubr.bf16.mxu0 0
    %610 = vmatmul.mubr.bf16.gmra.mxu0 %v566
    %v611 = vpop.f32.mrf.mxu0
    %v612 = vadd.f32 %v178, %v611
    %v613 = vpop.f32.mrf.mxu0
    %v614 = vpop.f32.mrf.mxu0
    %v615 = vadd.f32 %v179, %v614
    %v616 = vpop.f32.mrf.mxu0
    %617 = vmatprep.mubr.bf16.mxu0 0
    %618 = vmatmul.mubr.bf16.gmra.mxu0 %v569
    %v619 = vpop.f32.mrf.mxu0
    %v620 = vadd.f32 %v180, %v619
    %v621 = vpop.f32.mrf.mxu0
    %v622 = vpop.f32.mrf.mxu0
    %v623 = vadd.f32 %v181, %v622
    %v624 = vpop.f32.mrf.mxu0
    %625 = vdwg.mxu0
    %v626 = vsel %vm564, %v612, -inf
    %627 = vmax.xlane.f32.xlu0 %v626
    %v628 = vpop.xlane.xlu0 %627
    %v629 = vsel %vm564, %v615, -inf
    %630 = vmax.xlane.f32.xlu0 %v629
    %v631 = vpop.xlane.xlu0 %630
    %v632 = vsel %vm564, %v620, -inf
    %633 = vmax.xlane.f32.xlu0 %v632
    %v634 = vpop.xlane.xlu0 %633
    %v635 = vsel %vm564, %v623, -inf
    %636 = vmax.xlane.f32.xlu0 %v635
    %v637 = vpop.xlane.xlu0 %636
    %v638 = vsub.f32 %v612, %v628
    %v639 = vsub.f32 %v615, %v631
    %v640 = vsub.f32 %v620, %v634
    %v641 = vsub.f32 %v623, %v637
    %v642 = vmul.f32 %v638, 1.442695
    %v643 = vpow.pop %v642
    %v644 = vmul.f32 %v639, 1.442695
    %v645 = vpow.pop %v644
    %v646 = vmul.f32 %v640, 1.442695
    %v647 = vpow.pop %v646
    %v648 = vmul.f32 %v641, 1.442695
    %v649 = vpow.pop %v648
    %v650 = vsel %vm564, %v643, 0.0
    %651 = vadd.xlane.f32.xlu0 %v650
    %v652 = vpop.xlane.xlu0 %651
    %v653 = vsel %vm564, %v645, 0.0
    %654 = vadd.xlane.f32.xlu0 %v653
    %v655 = vpop.xlane.xlu0 %654
    %v656 = vsel %vm564, %v647, 0.0
    %657 = vadd.xlane.f32.xlu0 %v656
    %v658 = vpop.xlane.xlu0 %657
    %v659 = vsel %vm564, %v649, 0.0
    %660 = vadd.xlane.f32.xlu0 %v659
    %v661 = vpop.xlane.xlu0 %660
    %v662 = vrcp.pop %v652
    %v663 = vrcp.pop %v655
    %v664 = vrcp.pop %v658
    %v665 = vrcp.pop %v661
    %v666 = vmul.f32 %v643, %v662
    %v667 = vmul.f32 %v645, %v663
    %v668 = vmul.f32 %v647, %v664
    %v669 = vmul.f32 %v649, %v665
    %v670 = vpack.c.bf16 %v667, %v666
    %v671 = vpack.c.bf16 %v669, %v668
    %v673 = vsel %vm564, %v670, 0
    %v676 = vsel %vm564, %v671, 0
    %678 = vmatprep.subr.bf16.mxu0 0
    %679 = vmatpush1.bf16.msra.mxu0 0
    %680 = vmatprep.subr.bf16.mxu0 0
    %681 = vmatpush1.bf16.msra.mxu0 0
    %682 = vmatprep.subr.bf16.mxu0 0
    %683 = vmatpush1.bf16.msra.mxu0 0
    %684 = vmatprep.subr.bf16.mxu0 0
    %685 = vmatpush1.bf16.msra.mxu0 0
    %686 = vmatprep.subr.bf16.mxu0 0
    %687 = vmatpush1.bf16.msra.mxu0 0
    %688 = vmatprep.subr.bf16.mxu0 0
    %689 = vmatpush1.bf16.msra.mxu0 0
    %690 = vmatprep.subr.bf16.mxu0 0
    %691 = vmatpush1.bf16.msra.mxu0 %v563
    %692 = vmatprep.subr.bf16.mxu0 0
    %693 = vmatpush1.bf16.msra.mxu0 %v562
    %694 = vmatprep.subr.bf16.mxu0 0
    %695 = vmatpush2.bf16.msra.mxu0 0
    %696 = vmatprep.subr.bf16.mxu0 0
    %697 = vmatpush2.bf16.msra.mxu0 0
    %698 = vmatprep.subr.bf16.mxu0 0
    %699 = vmatpush2.bf16.msra.mxu0 0
    %700 = vmatprep.subr.bf16.mxu0 0
    %701 = vmatpush2.bf16.msra.mxu0 0
    %702 = vmatprep.subr.bf16.mxu0 0
    %703 = vmatpush2.bf16.msra.mxu0 0
    %704 = vmatprep.subr.bf16.mxu0 0
    %705 = vmatpush2.bf16.msra.mxu0 0
    %706 = vmatprep.subr.bf16.mxu0 0
    %707 = vmatpush2.bf16.msra.mxu0 0
    %708 = vmatprep.subr.bf16.mxu0 0
    %709 = vmatpush2.bf16.msra.mxu0 0
    %710 = vmatprep.mubr.bf16.mxu0 0
    %711 = vmatmul.mubr.bf16.gmra.mxu0 %v673
    %v712 = vpop.f32.mrf.mxu0
    %v713 = vadd.f32 0.0, %v712
    %v714 = vpop.f32.mrf.mxu0
    %v715 = vpop.f32.mrf.mxu0
    %v716 = vadd.f32 0.0, %v715
    %v717 = vpop.f32.mrf.mxu0
    %718 = vmatprep.mubr.bf16.mxu0 0
    %719 = vmatmul.mubr.bf16.gmra.mxu0 %v676
    %v720 = vpop.f32.mrf.mxu0
    %v721 = vadd.f32 0.0, %v720
    %v722 = vpop.f32.mrf.mxu0
    %v723 = vpop.f32.mrf.mxu0
    %v724 = vadd.f32 0.0, %v723
    %v725 = vpop.f32.mrf.mxu0
    %726 = vdwg.mxu0
    %729 = vrot.lane.b32.xlu0 %v522, 96
    %v730 = vpop.permute.xlu0 %729
    %731 = vrot.lane.b32.xlu0 %v523, 96
    %v732 = vpop.permute.xlu0 %731
    %735 = vrot.lane.b32.xlu0 %v560, 96
    %v736 = vpop.permute.xlu0 %735
    %737 = vrot.lane.b32.xlu0 %v561, 96
    %v738 = vpop.permute.xlu0 %737
    %v740 = vsel %vm564, %v730, 0
    %v743 = vsel %vm564, %v732, 0
    %v746 = vsel %vm564, %v736, 0
    %v749 = vsel %vm564, %v738, 0
    %751 = vmatprep.subr.bf16.mxu0 0
    %752 = vmatpush1.bf16.xpose.msra.mxu0 0
    %753 = vmatprep.subr.bf16.mxu0 0
    %754 = vmatpush1.bf16.xpose.msra.mxu0 0
    %755 = vmatprep.subr.bf16.mxu0 0
    %756 = vmatpush1.bf16.xpose.msra.mxu0 0
    %757 = vmatprep.subr.bf16.mxu0 0
    %758 = vmatpush1.bf16.xpose.msra.mxu0 0
    %759 = vmatprep.subr.bf16.mxu0 0
    %760 = vmatpush1.bf16.xpose.msra.mxu0 0
    %761 = vmatprep.subr.bf16.mxu0 0
    %762 = vmatpush1.bf16.xpose.msra.mxu0 0
    %763 = vmatprep.subr.bf16.mxu0 0
    %764 = vmatpush1.bf16.xpose.msra.mxu0 %v749
    %765 = vmatprep.subr.bf16.mxu0 0
    %766 = vmatpush1.bf16.xpose.msra.mxu0 %v746
    %767 = vmatprep.subr.bf16.mxu0 0
    %768 = vmatpush2.bf16.xpose.msra.mxu0 0
    %769 = vmatprep.subr.bf16.mxu0 0
    %770 = vmatpush2.bf16.xpose.msra.mxu0 0
    %771 = vmatprep.subr.bf16.mxu0 0
    %772 = vmatpush2.bf16.xpose.msra.mxu0 0
    %773 = vmatprep.subr.bf16.mxu0 0
    %774 = vmatpush2.bf16.xpose.msra.mxu0 0
    %775 = vmatprep.subr.bf16.mxu0 0
    %776 = vmatpush2.bf16.xpose.msra.mxu0 0
    %777 = vmatprep.subr.bf16.mxu0 0
    %778 = vmatpush2.bf16.xpose.msra.mxu0 0
    %779 = vmatprep.subr.bf16.mxu0 0
    %780 = vmatpush2.bf16.xpose.msra.mxu0 0
    %781 = vmatprep.subr.bf16.mxu0 0
    %782 = vmatpush2.bf16.xpose.msra.mxu0 0
    %783 = vmatprep.mubr.bf16.mxu0 0
    %784 = vmatmul.mubr.bf16.gmra.mxu0 %v740
    %v785 = vpop.f32.mrf.mxu0
    %v786 = vadd.f32 %v178, %v785
    %v787 = vpop.f32.mrf.mxu0
    %v788 = vpop.f32.mrf.mxu0
    %v789 = vadd.f32 %v179, %v788
    %v790 = vpop.f32.mrf.mxu0
    %791 = vmatprep.mubr.bf16.mxu0 0
    %792 = vmatmul.mubr.bf16.gmra.mxu0 %v743
    %v793 = vpop.f32.mrf.mxu0
    %v794 = vadd.f32 %v180, %v793
    %v795 = vpop.f32.mrf.mxu0
    %v796 = vpop.f32.mrf.mxu0
    %v797 = vadd.f32 %v181, %v796
    %v798 = vpop.f32.mrf.mxu0
    %799 = vdwg.mxu0
    %v800 = vsel %vm564, %v786, -inf
    %801 = vmax.xlane.f32.xlu0 %v800
    %v802 = vpop.xlane.xlu0 %801
    %v803 = vsel %vm564, %v789, -inf
    %804 = vmax.xlane.f32.xlu0 %v803
    %v805 = vpop.xlane.xlu0 %804
    %v806 = vsel %vm564, %v794, -inf
    %807 = vmax.xlane.f32.xlu0 %v806
    %v808 = vpop.xlane.xlu0 %807
    %v809 = vsel %vm564, %v797, -inf
    %810 = vmax.xlane.f32.xlu0 %v809
    %v811 = vpop.xlane.xlu0 %810
    %v812 = vsub.f32 %v786, %v802
    %v813 = vsub.f32 %v789, %v805
    %v814 = vsub.f32 %v794, %v808
    %v815 = vsub.f32 %v797, %v811
    %v816 = vmul.f32 %v812, 1.442695
    %v817 = vpow.pop %v816
    %v818 = vmul.f32 %v813, 1.442695
    %v819 = vpow.pop %v818
    %v820 = vmul.f32 %v814, 1.442695
    %v821 = vpow.pop %v820
    %v822 = vmul.f32 %v815, 1.442695
    %v823 = vpow.pop %v822
    %v824 = vsel %vm564, %v817, 0.0
    %825 = vadd.xlane.f32.xlu0 %v824
    %v826 = vpop.xlane.xlu0 %825
    %v827 = vsel %vm564, %v819, 0.0
    %828 = vadd.xlane.f32.xlu0 %v827
    %v829 = vpop.xlane.xlu0 %828
    %v830 = vsel %vm564, %v821, 0.0
    %831 = vadd.xlane.f32.xlu0 %v830
    %v832 = vpop.xlane.xlu0 %831
    %v833 = vsel %vm564, %v823, 0.0
    %834 = vadd.xlane.f32.xlu0 %v833
    %v835 = vpop.xlane.xlu0 %834
    %v836 = vrcp.pop %v826
    %v837 = vrcp.pop %v829
    %v838 = vrcp.pop %v832
    %v839 = vrcp.pop %v835
    %v840 = vmul.f32 %v817, %v836
    %v841 = vmul.f32 %v819, %v837
    %v842 = vmul.f32 %v821, %v838
    %v843 = vmul.f32 %v823, %v839
    %v844 = vpack.c.bf16 %v841, %v840
    %v845 = vpack.c.bf16 %v843, %v842
    %848 = vrot.lane.b32.xlu0 %v562, 96
    %v849 = vpop.permute.xlu0 %848
    %850 = vrot.lane.b32.xlu0 %v563, 96
    %v851 = vpop.permute.xlu0 %850
    %v855 = vsel %vm564, %v844, 0
    %v858 = vsel %vm564, %v845, 0
    %860 = vmatprep.subr.bf16.mxu0 0
    %861 = vmatpush1.bf16.msra.mxu0 0
    %862 = vmatprep.subr.bf16.mxu0 0
    %863 = vmatpush1.bf16.msra.mxu0 0
    %864 = vmatprep.subr.bf16.mxu0 0
    %865 = vmatpush1.bf16.msra.mxu0 0
    %866 = vmatprep.subr.bf16.mxu0 0
    %867 = vmatpush1.bf16.msra.mxu0 0
    %868 = vmatprep.subr.bf16.mxu0 0
    %869 = vmatpush1.bf16.msra.mxu0 0
    %870 = vmatprep.subr.bf16.mxu0 0
    %871 = vmatpush1.bf16.msra.mxu0 0
    %872 = vmatprep.subr.bf16.mxu0 0
    %873 = vmatpush1.bf16.msra.mxu0 %v851
    %874 = vmatprep.subr.bf16.mxu0 0
    %875 = vmatpush1.bf16.msra.mxu0 %v849
    %876 = vmatprep.subr.bf16.mxu0 0
    %877 = vmatpush2.bf16.msra.mxu0 0
    %878 = vmatprep.subr.bf16.mxu0 0
    %879 = vmatpush2.bf16.msra.mxu0 0
    %880 = vmatprep.subr.bf16.mxu0 0
    %881 = vmatpush2.bf16.msra.mxu0 0
    %882 = vmatprep.subr.bf16.mxu0 0
    %883 = vmatpush2.bf16.msra.mxu0 0
    %884 = vmatprep.subr.bf16.mxu0 0
    %885 = vmatpush2.bf16.msra.mxu0 0
    %886 = vmatprep.subr.bf16.mxu0 0
    %887 = vmatpush2.bf16.msra.mxu0 0
    %888 = vmatprep.subr.bf16.mxu0 0
    %889 = vmatpush2.bf16.msra.mxu0 0
    %890 = vmatprep.subr.bf16.mxu0 0
    %891 = vmatpush2.bf16.msra.mxu0 0
    %892 = vmatprep.mubr.bf16.mxu0 0
    %893 = vmatmul.mubr.bf16.gmra.mxu0 %v855
    %v894 = vpop.f32.mrf.mxu0
    %v895 = vadd.f32 0.0, %v894
    %v896 = vpop.f32.mrf.mxu0
    %v897 = vpop.f32.mrf.mxu0
    %v898 = vadd.f32 0.0, %v897
    %v899 = vpop.f32.mrf.mxu0
    %900 = vmatprep.mubr.bf16.mxu0 0
    %901 = vmatmul.mubr.bf16.gmra.mxu0 %v858
    %v902 = vpop.f32.mrf.mxu0
    %v903 = vadd.f32 0.0, %v902
    %v904 = vpop.f32.mrf.mxu0
    %v905 = vpop.f32.mrf.mxu0
    %v906 = vadd.f32 0.0, %v905
    %v907 = vpop.f32.mrf.mxu0
    %908 = vdwg.mxu0
    %909 = vrot.lane.b32.xlu0 %v522, 64
    %v910 = vpop.permute.xlu0 %909
    %911 = vrot.lane.b32.xlu0 %v523, 64
    %v912 = vpop.permute.xlu0 %911
    %913 = vrot.lane.b32.xlu0 %v560, 64
    %v914 = vpop.permute.xlu0 %913
    %915 = vrot.lane.b32.xlu0 %v561, 64
    %v916 = vpop.permute.xlu0 %915
    %v918 = vsel %vm564, %v910, 0
    %v921 = vsel %vm564, %v912, 0
    %v924 = vsel %vm564, %v914, 0
    %v927 = vsel %vm564, %v916, 0
    %929 = vmatprep.subr.bf16.mxu0 0
    %930 = vmatpush1.bf16.xpose.msra.mxu0 0
    %931 = vmatprep.subr.bf16.mxu0 0
    %932 = vmatpush1.bf16.xpose.msra.mxu0 0
    %933 = vmatprep.subr.bf16.mxu0 0
    %934 = vmatpush1.bf16.xpose.msra.mxu0 0
    %935 = vmatprep.subr.bf16.mxu0 0
    %936 = vmatpush1.bf16.xpose.msra.mxu0 0
    %937 = vmatprep.subr.bf16.mxu0 0
    %938 = vmatpush1.bf16.xpose.msra.mxu0 0
    %939 = vmatprep.subr.bf16.mxu0 0
    %940 = vmatpush1.bf16.xpose.msra.mxu0 0
    %941 = vmatprep.subr.bf16.mxu0 0
    %942 = vmatpush1.bf16.xpose.msra.mxu0 %v927
    %943 = vmatprep.subr.bf16.mxu0 0
    %944 = vmatpush1.bf16.xpose.msra.mxu0 %v924
    %945 = vmatprep.subr.bf16.mxu0 0
    %946 = vmatpush2.bf16.xpose.msra.mxu0 0
    %947 = vmatprep.subr.bf16.mxu0 0
    %948 = vmatpush2.bf16.xpose.msra.mxu0 0
    %949 = vmatprep.subr.bf16.mxu0 0
    %950 = vmatpush2.bf16.xpose.msra.mxu0 0
    %951 = vmatprep.subr.bf16.mxu0 0
    %952 = vmatpush2.bf16.xpose.msra.mxu0 0
    %953 = vmatprep.subr.bf16.mxu0 0
    %954 = vmatpush2.bf16.xpose.msra.mxu0 0
    %955 = vmatprep.subr.bf16.mxu0 0
    %956 = vmatpush2.bf16.xpose.msra.mxu0 0
    %957 = vmatprep.subr.bf16.mxu0 0
    %958 = vmatpush2.bf16.xpose.msra.mxu0 0
    %959 = vmatprep.subr.bf16.mxu0 0
    %960 = vmatpush2.bf16.xpose.msra.mxu0 0
    %961 = vmatprep.mubr.bf16.mxu0 0
    %962 = vmatmul.mubr.bf16.gmra.mxu0 %v918
    %v963 = vpop.f32.mrf.mxu0
    %v964 = vadd.f32 %v178, %v963
    %v965 = vpop.f32.mrf.mxu0
    %v966 = vpop.f32.mrf.mxu0
    %v967 = vadd.f32 %v179, %v966
    %v968 = vpop.f32.mrf.mxu0
    %969 = vmatprep.mubr.bf16.mxu0 0
    %970 = vmatmul.mubr.bf16.gmra.mxu0 %v921
    %v971 = vpop.f32.mrf.mxu0
    %v972 = vadd.f32 %v180, %v971
    %v973 = vpop.f32.mrf.mxu0
    %v974 = vpop.f32.mrf.mxu0
    %v975 = vadd.f32 %v181, %v974
    %v976 = vpop.f32.mrf.mxu0
    %977 = vdwg.mxu0
    %v978 = vsel %vm564, %v964, -inf
    %979 = vmax.xlane.f32.xlu0 %v978
    %v980 = vpop.xlane.xlu0 %979
    %v981 = vsel %vm564, %v967, -inf
    %982 = vmax.xlane.f32.xlu0 %v981
    %v983 = vpop.xlane.xlu0 %982
    %v984 = vsel %vm564, %v972, -inf
    %985 = vmax.xlane.f32.xlu0 %v984
    %v986 = vpop.xlane.xlu0 %985
    %v987 = vsel %vm564, %v975, -inf
    %988 = vmax.xlane.f32.xlu0 %v987
    %v989 = vpop.xlane.xlu0 %988
    %v990 = vsub.f32 %v964, %v980
    %v991 = vsub.f32 %v967, %v983
    %v992 = vsub.f32 %v972, %v986
    %v993 = vsub.f32 %v975, %v989
    %v994 = vmul.f32 %v990, 1.442695
    %v995 = vpow.pop %v994
    %v996 = vmul.f32 %v991, 1.442695
    %v997 = vpow.pop %v996
    %v998 = vmul.f32 %v992, 1.442695
    %v999 = vpow.pop %v998
    %v1000 = vmul.f32 %v993, 1.442695
    %v1001 = vpow.pop %v1000
    %v1002 = vsel %vm564, %v995, 0.0
    %1003 = vadd.xlane.f32.xlu0 %v1002
    %v1004 = vpop.xlane.xlu0 %1003
    %v1005 = vsel %vm564, %v997, 0.0
    %1006 = vadd.xlane.f32.xlu0 %v1005
    %v1007 = vpop.xlane.xlu0 %1006
    %v1008 = vsel %vm564, %v999, 0.0
    %1009 = vadd.xlane.f32.xlu0 %v1008
    %v1010 = vpop.xlane.xlu0 %1009
    %v1011 = vsel %vm564, %v1001, 0.0
    %1012 = vadd.xlane.f32.xlu0 %v1011
    %v1013 = vpop.xlane.xlu0 %1012
    %v1014 = vrcp.pop %v1004
    %v1015 = vrcp.pop %v1007
    %v1016 = vrcp.pop %v1010
    %v1017 = vrcp.pop %v1013
    %v1018 = vmul.f32 %v995, %v1014
    %v1019 = vmul.f32 %v997, %v1015
    %v1020 = vmul.f32 %v999, %v1016
    %v1021 = vmul.f32 %v1001, %v1017
    %v1022 = vpack.c.bf16 %v1019, %v1018
    %v1023 = vpack.c.bf16 %v1021, %v1020
    %1024 = vrot.lane.b32.xlu0 %v562, 64
    %v1025 = vpop.permute.xlu0 %1024
    %1026 = vrot.lane.b32.xlu0 %v563, 64
    %v1027 = vpop.permute.xlu0 %1026
    %v1031 = vsel %vm564, %v1022, 0
    %v1034 = vsel %vm564, %v1023, 0
    %1036 = vmatprep.subr.bf16.mxu0 0
    %1037 = vmatpush1.bf16.msra.mxu0 0
    %1038 = vmatprep.subr.bf16.mxu0 0
    %1039 = vmatpush1.bf16.msra.mxu0 0
    %1040 = vmatprep.subr.bf16.mxu0 0
    %1041 = vmatpush1.bf16.msra.mxu0 0
    %1042 = vmatprep.subr.bf16.mxu0 0
    %1043 = vmatpush1.bf16.msra.mxu0 0
    %1044 = vmatprep.subr.bf16.mxu0 0
    %1045 = vmatpush1.bf16.msra.mxu0 0
    %1046 = vmatprep.subr.bf16.mxu0 0
    %1047 = vmatpush1.bf16.msra.mxu0 0
    %1048 = vmatprep.subr.bf16.mxu0 0
    %1049 = vmatpush1.bf16.msra.mxu0 %v1027
    %1050 = vmatprep.subr.bf16.mxu0 0
    %1051 = vmatpush1.bf16.msra.mxu0 %v1025
    %1052 = vmatprep.subr.bf16.mxu0 0
    %1053 = vmatpush2.bf16.msra.mxu0 0
    %1054 = vmatprep.subr.bf16.mxu0 0
    %1055 = vmatpush2.bf16.msra.mxu0 0
    %1056 = vmatprep.subr.bf16.mxu0 0
    %1057 = vmatpush2.bf16.msra.mxu0 0
    %1058 = vmatprep.subr.bf16.mxu0 0
    %1059 = vmatpush2.bf16.msra.mxu0 0
    %1060 = vmatprep.subr.bf16.mxu0 0
    %1061 = vmatpush2.bf16.msra.mxu0 0
    %1062 = vmatprep.subr.bf16.mxu0 0
    %1063 = vmatpush2.bf16.msra.mxu0 0
    %1064 = vmatprep.subr.bf16.mxu0 0
    %1065 = vmatpush2.bf16.msra.mxu0 0
    %1066 = vmatprep.subr.bf16.mxu0 0
    %1067 = vmatpush2.bf16.msra.mxu0 0
    %1068 = vmatprep.mubr.bf16.mxu0 0
    %1069 = vmatmul.mubr.bf16.gmra.mxu0 %v1031
    %v1070 = vpop.f32.mrf.mxu0
    %v1071 = vadd.f32 0.0, %v1070
    %v1072 = vpop.f32.mrf.mxu0
    %v1073 = vpop.f32.mrf.mxu0
    %v1074 = vadd.f32 0.0, %v1073
    %v1075 = vpop.f32.mrf.mxu0
    %1076 = vmatprep.mubr.bf16.mxu0 0
    %1077 = vmatmul.mubr.bf16.gmra.mxu0 %v1034
    %v1078 = vpop.f32.mrf.mxu0
    %v1079 = vadd.f32 0.0, %v1078
    %v1080 = vpop.f32.mrf.mxu0
    %v1081 = vpop.f32.mrf.mxu0
    %v1082 = vadd.f32 0.0, %v1081
    %v1083 = vpop.f32.mrf.mxu0
    %1084 = vdwg.mxu0
    %1085 = vrot.lane.b32.xlu0 %v522, 32
    %v1086 = vpop.permute.xlu0 %1085
    %1087 = vrot.lane.b32.xlu0 %v523, 32
    %v1088 = vpop.permute.xlu0 %1087
    %1089 = vrot.lane.b32.xlu0 %v560, 32
    %v1090 = vpop.permute.xlu0 %1089
    %1091 = vrot.lane.b32.xlu0 %v561, 32
    %v1092 = vpop.permute.xlu0 %1091
    %v1094 = vsel %vm564, %v1086, 0
    %v1097 = vsel %vm564, %v1088, 0
    %v1100 = vsel %vm564, %v1090, 0
    %v1103 = vsel %vm564, %v1092, 0
    %1105 = vmatprep.subr.bf16.mxu0 0
    %1106 = vmatpush1.bf16.xpose.msra.mxu0 0
    %1107 = vmatprep.subr.bf16.mxu0 0
    %1108 = vmatpush1.bf16.xpose.msra.mxu0 0
    %1109 = vmatprep.subr.bf16.mxu0 0
    %1110 = vmatpush1.bf16.xpose.msra.mxu0 0
    %1111 = vmatprep.subr.bf16.mxu0 0
    %1112 = vmatpush1.bf16.xpose.msra.mxu0 0
    %1113 = vmatprep.subr.bf16.mxu0 0
    %1114 = vmatpush1.bf16.xpose.msra.mxu0 0
    %1115 = vmatprep.subr.bf16.mxu0 0
    %1116 = vmatpush1.bf16.xpose.msra.mxu0 0
    %1117 = vmatprep.subr.bf16.mxu0 0
    %1118 = vmatpush1.bf16.xpose.msra.mxu0 %v1103
    %1119 = vmatprep.subr.bf16.mxu0 0
    %1120 = vmatpush1.bf16.xpose.msra.mxu0 %v1100
    %1121 = vmatprep.subr.bf16.mxu0 0
    %1122 = vmatpush2.bf16.xpose.msra.mxu0 0
    %1123 = vmatprep.subr.bf16.mxu0 0
    %1124 = vmatpush2.bf16.xpose.msra.mxu0 0
    %1125 = vmatprep.subr.bf16.mxu0 0
    %1126 = vmatpush2.bf16.xpose.msra.mxu0 0
    %1127 = vmatprep.subr.bf16.mxu0 0
    %1128 = vmatpush2.bf16.xpose.msra.mxu0 0
    %1129 = vmatprep.subr.bf16.mxu0 0
    %1130 = vmatpush2.bf16.xpose.msra.mxu0 0
    %1131 = vmatprep.subr.bf16.mxu0 0
    %1132 = vmatpush2.bf16.xpose.msra.mxu0 0
    %1133 = vmatprep.subr.bf16.mxu0 0
    %1134 = vmatpush2.bf16.xpose.msra.mxu0 0
    %1135 = vmatprep.subr.bf16.mxu0 0
    %1136 = vmatpush2.bf16.xpose.msra.mxu0 0
    %1137 = vmatprep.mubr.bf16.mxu0 0
    %1138 = vmatmul.mubr.bf16.gmra.mxu0 %v1094
    %v1139 = vpop.f32.mrf.mxu0
    %v1140 = vadd.f32 %v178, %v1139
    %v1141 = vpop.f32.mrf.mxu0
    %v1142 = vpop.f32.mrf.mxu0
    %v1143 = vadd.f32 %v179, %v1142
    %v1144 = vpop.f32.mrf.mxu0
    %1145 = vmatprep.mubr.bf16.mxu0 0
    %1146 = vmatmul.mubr.bf16.gmra.mxu0 %v1097
    %v1147 = vpop.f32.mrf.mxu0
    %v1148 = vadd.f32 %v180, %v1147
    %v1149 = vpop.f32.mrf.mxu0
    %v1150 = vpop.f32.mrf.mxu0
    %v1151 = vadd.f32 %v181, %v1150
    %v1152 = vpop.f32.mrf.mxu0
    %1153 = vdwg.mxu0
    %v1154 = vsel %vm564, %v1140, -inf
    %1155 = vmax.xlane.f32.xlu0 %v1154
    %v1156 = vpop.xlane.xlu0 %1155
    %v1157 = vsel %vm564, %v1143, -inf
    %1158 = vmax.xlane.f32.xlu0 %v1157
    %v1159 = vpop.xlane.xlu0 %1158
    %v1160 = vsel %vm564, %v1148, -inf
    %1161 = vmax.xlane.f32.xlu0 %v1160
    %v1162 = vpop.xlane.xlu0 %1161
    %v1163 = vsel %vm564, %v1151, -inf
    %1164 = vmax.xlane.f32.xlu0 %v1163
    %v1165 = vpop.xlane.xlu0 %1164
    %v1166 = vsub.f32 %v1140, %v1156
    %v1167 = vsub.f32 %v1143, %v1159
    %v1168 = vsub.f32 %v1148, %v1162
    %v1169 = vsub.f32 %v1151, %v1165
    %v1170 = vmul.f32 %v1166, 1.442695
    %v1171 = vpow.pop %v1170
    %v1172 = vmul.f32 %v1167, 1.442695
    %v1173 = vpow.pop %v1172
    %v1174 = vmul.f32 %v1168, 1.442695
    %v1175 = vpow.pop %v1174
    %v1176 = vmul.f32 %v1169, 1.442695
    %v1177 = vpow.pop %v1176
    %v1178 = vsel %vm564, %v1171, 0.0
    %1179 = vadd.xlane.f32.xlu0 %v1178
    %v1180 = vpop.xlane.xlu0 %1179
    %v1181 = vsel %vm564, %v1173, 0.0
    %1182 = vadd.xlane.f32.xlu0 %v1181
    %v1183 = vpop.xlane.xlu0 %1182
    %v1184 = vsel %vm564, %v1175, 0.0
    %1185 = vadd.xlane.f32.xlu0 %v1184
    %v1186 = vpop.xlane.xlu0 %1185
    %v1187 = vsel %vm564, %v1177, 0.0
    %1188 = vadd.xlane.f32.xlu0 %v1187
    %v1189 = vpop.xlane.xlu0 %1188
    %v1190 = vrcp.pop %v1180
    %v1191 = vrcp.pop %v1183
    %v1192 = vrcp.pop %v1186
    %v1193 = vrcp.pop %v1189
    %v1194 = vmul.f32 %v1171, %v1190
    %v1195 = vmul.f32 %v1173, %v1191
    %v1196 = vmul.f32 %v1175, %v1192
    %v1197 = vmul.f32 %v1177, %v1193
    %v1198 = vpack.c.bf16 %v1195, %v1194
    %v1199 = vpack.c.bf16 %v1197, %v1196
    %1200 = vrot.lane.b32.xlu0 %v562, 32
    %v1201 = vpop.permute.xlu0 %1200
    %1202 = vrot.lane.b32.xlu0 %v563, 32
    %v1203 = vpop.permute.xlu0 %1202
    %v1207 = vsel %vm564, %v1198, 0
    %v1210 = vsel %vm564, %v1199, 0
    %1212 = vmatprep.subr.bf16.mxu0 0
    %1213 = vmatpush1.bf16.msra.mxu0 0
    %1214 = vmatprep.subr.bf16.mxu0 0
    %1215 = vmatpush1.bf16.msra.mxu0 0
    %1216 = vmatprep.subr.bf16.mxu0 0
    %1217 = vmatpush1.bf16.msra.mxu0 0
    %1218 = vmatprep.subr.bf16.mxu0 0
    %1219 = vmatpush1.bf16.msra.mxu0 0
    %1220 = vmatprep.subr.bf16.mxu0 0
    %1221 = vmatpush1.bf16.msra.mxu0 0
    %1222 = vmatprep.subr.bf16.mxu0 0
    %1223 = vmatpush1.bf16.msra.mxu0 0
    %1224 = vmatprep.subr.bf16.mxu0 0
    %1225 = vmatpush1.bf16.msra.mxu0 %v1203
    %1226 = vmatprep.subr.bf16.mxu0 0
    %1227 = vmatpush1.bf16.msra.mxu0 %v1201
    %1228 = vmatprep.subr.bf16.mxu0 0
    %1229 = vmatpush2.bf16.msra.mxu0 0
    %1230 = vmatprep.subr.bf16.mxu0 0
    %1231 = vmatpush2.bf16.msra.mxu0 0
    %1232 = vmatprep.subr.bf16.mxu0 0
    %1233 = vmatpush2.bf16.msra.mxu0 0
    %1234 = vmatprep.subr.bf16.mxu0 0
    %1235 = vmatpush2.bf16.msra.mxu0 0
    %1236 = vmatprep.subr.bf16.mxu0 0
    %1237 = vmatpush2.bf16.msra.mxu0 0
    %1238 = vmatprep.subr.bf16.mxu0 0
    %1239 = vmatpush2.bf16.msra.mxu0 0
    %1240 = vmatprep.subr.bf16.mxu0 0
    %1241 = vmatpush2.bf16.msra.mxu0 0
    %1242 = vmatprep.subr.bf16.mxu0 0
    %1243 = vmatpush2.bf16.msra.mxu0 0
    %1244 = vmatprep.mubr.bf16.mxu0 0
    %1245 = vmatmul.mubr.bf16.gmra.mxu0 %v1207
    %v1246 = vpop.f32.mrf.mxu0
    %v1247 = vadd.f32 0.0, %v1246
    %v1248 = vpop.f32.mrf.mxu0
    %v1249 = vpop.f32.mrf.mxu0
    %v1250 = vadd.f32 0.0, %v1249
    %v1251 = vpop.f32.mrf.mxu0
    %1252 = vmatprep.mubr.bf16.mxu0 0
    %1253 = vmatmul.mubr.bf16.gmra.mxu0 %v1210
    %v1254 = vpop.f32.mrf.mxu0
    %v1255 = vadd.f32 0.0, %v1254
    %v1256 = vpop.f32.mrf.mxu0
    %v1257 = vpop.f32.mrf.mxu0
    %v1258 = vadd.f32 0.0, %v1257
    %v1259 = vpop.f32.mrf.mxu0
    %1260 = vdwg.mxu0
    %1265 = vrot.lane.b32.xlu0 %v895, 32
    %v1266 = vpop.permute.xlu0 %1265
    %1267 = vrot.lane.b32.xlu0 %v898, 32
    %v1268 = vpop.permute.xlu0 %1267
    %1269 = vrot.lane.b32.xlu0 %v903, 32
    %v1270 = vpop.permute.xlu0 %1269
    %1271 = vrot.lane.b32.xlu0 %v906, 32
    %v1272 = vpop.permute.xlu0 %1271
    %1281 = vrot.lane.b32.xlu0 %v1071, 64
    %v1282 = vpop.permute.xlu0 %1281
    %1283 = vrot.lane.b32.xlu0 %v1074, 64
    %v1284 = vpop.permute.xlu0 %1283
    %1285 = vrot.lane.b32.xlu0 %v1079, 64
    %v1286 = vpop.permute.xlu0 %1285
    %1287 = vrot.lane.b32.xlu0 %v1082, 64
    %v1288 = vpop.permute.xlu0 %1287
    %1297 = vrot.lane.b32.xlu0 %v1247, 96
    %v1298 = vpop.permute.xlu0 %1297
    %1299 = vrot.lane.b32.xlu0 %v1250, 96
    %v1300 = vpop.permute.xlu0 %1299
    %1301 = vrot.lane.b32.xlu0 %v1255, 96
    %v1302 = vpop.permute.xlu0 %1301
    %1303 = vrot.lane.b32.xlu0 %v1258, 96
    %v1304 = vpop.permute.xlu0 %1303
    %v1309 = vsel %vm564, %v713, %v1266
    %v1310 = vsel %vm564, %v716, %v1268
    %v1311 = vsel %vm564, %v721, %v1270
    %v1312 = vsel %vm564, %v724, %v1272
    %vm1313 = vcmask 523264
    %v1314 = vsel %vm1313, %v1309, %v1282
    %v1315 = vsel %vm1313, %v1310, %v1284
    %v1316 = vsel %vm1313, %v1311, %v1286
    %v1317 = vsel %vm1313, %v1312, %v1288
    %vm1318 = vcmask 785408
    %v1319 = vsel %vm1318, %v1314, %v1298
    %v1320 = vsel %vm1318, %v1315, %v1300
    %v1321 = vsel %vm1318, %v1316, %v1302
    %v1322 = vsel %vm1318, %v1317, %v1304
    %v1323 = vpack.c.bf16 %v1320, %v1319
    %v1324 = vpack.c.bf16 %v1322, %v1321
    %v1325 = vld [vmem:[#allocation13] sm:$0xf]
    %v1326 = vld [vmem:[#allocation13 + $0x4] sm:$0xf]
    %v1327 = vld [vmem:[#allocation13 + $0x8] sm:$0xf]
    %v1328 = vld [vmem:[#allocation13 + $0xc] sm:$0xf]
    %v1329 = vld [vmem:[#allocation13 + $0x10] sm:$0xf]
    %v1330 = vld [vmem:[#allocation13 + $0x14] sm:$0xf]
    %v1331 = vld [vmem:[#allocation13 + $0x18] sm:$0xf]
    %v1332 = vld [vmem:[#allocation13 + $0x1c] sm:$0xf]
    %v1333 = vld [vmem:[#allocation13 + $0x20] sm:$0xf]
    %v1334 = vld [vmem:[#allocation13 + $0x24] sm:$0xf]
    %v1335 = vld [vmem:[#allocation13 + $0x28] sm:$0xf]
    %v1336 = vld [vmem:[#allocation13 + $0x2c] sm:$0xf]
    %v1337 = vld [vmem:[#allocation13 + $0x30] sm:$0xf]
    %v1338 = vld [vmem:[#allocation13 + $0x34] sm:$0xf]
    %v1339 = vld [vmem:[#allocation13 + $0x38] sm:$0xf]
    %v1340 = vld [vmem:[#allocation13 + $0x3c] sm:$0xf]
    %v1357 = vunpack.c.l.b16 %v1325
    %v1358 = vunpack.c.l.b16 %v1326
    %v1359 = vunpack.c.l.b16 %v1327
    %v1360 = vunpack.c.l.b16 %v1328
    %v1361 = vunpack.c.l.b16 %v1329
    %v1362 = vunpack.c.l.b16 %v1330
    %v1363 = vunpack.c.l.b16 %v1331
    %v1364 = vunpack.c.l.b16 %v1332
    %v1365 = vunpack.c.l.b16 %v1333
    %v1366 = vunpack.c.l.b16 %v1334
    %v1367 = vunpack.c.l.b16 %v1335
    %v1368 = vunpack.c.l.b16 %v1336
    %v1369 = vunpack.c.l.b16 %v1337
    %v1370 = vunpack.c.l.b16 %v1338
    %v1371 = vunpack.c.l.b16 %v1339
    %v1372 = vunpack.c.l.b16 %v1340
    %v1373 = vpack.c.b16 %v1358, %v1357
    %v1374 = vpack.c.b16 %v1360, %v1359
    %v1375 = vpack.c.b16 %v1362, %v1361
    %v1376 = vpack.c.b16 %v1364, %v1363
    %v1377 = vpack.c.b16 %v1366, %v1365
    %v1378 = vpack.c.b16 %v1368, %v1367
    %v1379 = vpack.c.b16 %v1370, %v1369
    %v1380 = vpack.c.b16 %v1372, %v1371
    %1389 = vmatprep.subr.bf16.mxu0 0
    %1390 = vmatpush1.bf16.msra.mxu0 %v1380
    %1391 = vmatprep.subr.bf16.mxu0 0
    %1392 = vmatpush1.bf16.msra.mxu0 %v1379
    %1393 = vmatprep.subr.bf16.mxu0 0
    %1394 = vmatpush1.bf16.msra.mxu0 %v1378
    %1395 = vmatprep.subr.bf16.mxu0 0
    %1396 = vmatpush1.bf16.msra.mxu0 %v1377
    %1397 = vmatprep.subr.bf16.mxu0 0
    %1398 = vmatpush1.bf16.msra.mxu0 %v1376
    %1399 = vmatprep.subr.bf16.mxu0 0
    %1400 = vmatpush1.bf16.msra.mxu0 %v1375
    %1401 = vmatprep.subr.bf16.mxu0 0
    %1402 = vmatpush1.bf16.msra.mxu0 %v1374
    %1403 = vmatprep.subr.bf16.mxu0 0
    %1404 = vmatpush1.bf16.msra.mxu0 %v1373
    %1405 = vmatprep.subr.bf16.mxu0 0
    %1406 = vmatpush2.bf16.msra.mxu0 0
    %1407 = vmatprep.subr.bf16.mxu0 0
    %1408 = vmatpush2.bf16.msra.mxu0 0
    %1409 = vmatprep.subr.bf16.mxu0 0
    %1410 = vmatpush2.bf16.msra.mxu0 0
    %1411 = vmatprep.subr.bf16.mxu0 0
    %1412 = vmatpush2.bf16.msra.mxu0 0
    %1413 = vmatprep.subr.bf16.mxu0 0
    %1414 = vmatpush2.bf16.msra.mxu0 0
    %1415 = vmatprep.subr.bf16.mxu0 0
    %1416 = vmatpush2.bf16.msra.mxu0 0
    %1417 = vmatprep.subr.bf16.mxu0 0
    %1418 = vmatpush2.bf16.msra.mxu0 0
    %1419 = vmatprep.subr.bf16.mxu0 0
    %1420 = vmatpush2.bf16.msra.mxu0 0
    %1421 = vmatprep.mubr.bf16.mxu0 0
    %1422 = vmatmul.mubr.bf16.gmra.mxu0 %v1323
    %v1423 = vpop.f32.mrf.mxu0
    %v1424 = vadd.f32 0.0, %v1423
    %v1425 = vpop.f32.mrf.mxu0
    %v1426 = vpop.f32.mrf.mxu0
    %v1427 = vadd.f32 0.0, %v1426
    %v1428 = vpop.f32.mrf.mxu0
    %1429 = vmatprep.mubr.bf16.mxu0 0
    %1430 = vmatmul.mubr.bf16.gmra.mxu0 %v1324
    %v1431 = vpop.f32.mrf.mxu0
    %v1432 = vadd.f32 0.0, %v1431
    %v1433 = vpop.f32.mrf.mxu0
    %v1434 = vpop.f32.mrf.mxu0
    %v1435 = vadd.f32 0.0, %v1434
    %v1436 = vpop.f32.mrf.mxu0
    %1437 = vdwg.mxu0
    %v1438 = vadd.f32 %v162, %v1424
    %v1439 = vadd.f32 %v163, %v1427
    %v1440 = vadd.f32 %v164, %v1432
    %v1441 = vadd.f32 %v165, %v1435
    %v1442 = vld [vmem:[%s10] sm:$0x1]
    %v1443 = vmul.f32 %v1438, %v1438
    %v1444 = vmul.f32 %v1439, %v1439
    %v1445 = vmul.f32 %v1440, %v1440
    %v1446 = vmul.f32 %v1441, %v1441
    %1447 = vadd.xlane.f32.xlu0 %v1443
    %v1448 = vpop.xlane.xlu0 %1447
    %1449 = vadd.xlane.f32.xlu0 %v1444
    %v1450 = vpop.xlane.xlu0 %1449
    %1451 = vadd.xlane.f32.xlu0 %v1445
    %v1452 = vpop.xlane.xlu0 %1451
    %1453 = vadd.xlane.f32.xlu0 %v1446
    %v1454 = vpop.xlane.xlu0 %1453
    %v1455 = vmul.f32 %v1448, %v195
    %v1456 = vmul.f32 %v1450, %v195
    %v1457 = vmul.f32 %v1452, %v195
    %v1458 = vmul.f32 %v1454, %v195
    %v1459 = vadd.f32 %v1455, 1e-05
    %v1460 = vadd.f32 %v1456, 1e-05
    %v1461 = vadd.f32 %v1457, 1e-05
    %v1462 = vadd.f32 %v1458, 1e-05
    %v1463 = vrsqrt.pop %v1459
    %v1464 = vrsqrt.pop %v1460
    %v1465 = vrsqrt.pop %v1461
    %v1466 = vrsqrt.pop %v1462
    %v1467 = vmul.f32 %v1438, %v1463
    %v1468 = vmul.f32 %v1439, %v1464
    %v1469 = vmul.f32 %v1440, %v1465
    %v1470 = vmul.f32 %v1441, %v1466
    %v1472 = vlaneseq
    %v1473 = vshrl.u32 %v1472, 7
    %v1474 = vsub.s32 0, %v1473
    %v1475 = vrot.slane %v1442, %v1474
    %v1477 = vmul.f32 %v1467, %v1475
    %v1478 = vmul.f32 %v1468, %v1475
    %v1479 = vmul.f32 %v1469, %v1475
    %v1480 = vmul.f32 %v1470, %v1475
    %v1481 = vpack.c.bf16 %v1478, %v1477
    %v1482 = vpack.c.bf16 %v1480, %v1479
    %v1483 = vld [vmem:[#allocation14] sm:$0xff]
    %v1484 = vld [vmem:[#allocation14 + $0x8] sm:$0xff]
    %v1485 = vld [vmem:[#allocation14 + $0x10] sm:$0xff]
    %v1486 = vld [vmem:[#allocation14 + $0x18] sm:$0xff]
    %v1487 = vld [vmem:[#allocation14 + $0x20] sm:$0xff]
    %v1488 = vld [vmem:[#allocation14 + $0x28] sm:$0xff]
    %v1489 = vld [vmem:[#allocation14 + $0x30] sm:$0xff]
    %v1490 = vld [vmem:[#allocation14 + $0x38] sm:$0xff]
    %v1491 = vld [vmem:[#allocation14 + $0x40] sm:$0xff]
    %v1492 = vld [vmem:[#allocation14 + $0x48] sm:$0xff]
    %v1493 = vld [vmem:[#allocation14 + $0x50] sm:$0xff]
    %v1494 = vld [vmem:[#allocation14 + $0x58] sm:$0xff]
    %v1495 = vld [vmem:[#allocation14 + $0x60] sm:$0xff]
    %v1496 = vld [vmem:[#allocation14 + $0x68] sm:$0xff]
    %v1497 = vld [vmem:[#allocation14 + $0x70] sm:$0xff]
    %v1498 = vld [vmem:[#allocation14 + $0x78] sm:$0xff]
    %v1499 = vld [vmem:[#allocation14 + $0x80] sm:$0xff]
    %v1500 = vld [vmem:[#allocation14 + $0x88] sm:$0xff]
    %v1501 = vld [vmem:[#allocation14 + $0x90] sm:$0xff]
    %v1502 = vld [vmem:[#allocation14 + $0x98] sm:$0xff]
    %v1503 = vld [vmem:[#allocation14 + $0xa0] sm:$0xff]
    %v1504 = vld [vmem:[#allocation14 + $0xa8] sm:$0xff]
    %v1505 = vld [vmem:[#allocation14 + $0xb0] sm:$0xff]
    %v1506 = vld [vmem:[#allocation14 + $0xb8] sm:$0xff]
    %v1507 = vld [vmem:[#allocation14 + $0xc0] sm:$0xff]
    %v1508 = vld [vmem:[#allocation14 + $0xc8] sm:$0xff]
    %v1509 = vld [vmem:[#allocation14 + $0xd0] sm:$0xff]
    %v1510 = vld [vmem:[#allocation14 + $0xd8] sm:$0xff]
    %v1511 = vld [vmem:[#allocation14 + $0xe0] sm:$0xff]
    %v1512 = vld [vmem:[#allocation14 + $0xe8] sm:$0xff]
    %v1513 = vld [vmem:[#allocation14 + $0xf0] sm:$0xff]
    %v1514 = vld [vmem:[#allocation14 + $0xf8] sm:$0xff]
    %v1515 = vld [vmem:[#allocation14 + $0x100] sm:$0xff]
    %v1516 = vld [vmem:[#allocation14 + $0x108] sm:$0xff]
    %v1517 = vld [vmem:[#allocation14 + $0x110] sm:$0xff]
    %v1518 = vld [vmem:[#allocation14 + $0x118] sm:$0xff]
    %v1519 = vld [vmem:[#allocation14 + $0x120] sm:$0xff]
    %v1520 = vld [vmem:[#allocation14 + $0x128] sm:$0xff]
    %v1521 = vld [vmem:[#allocation14 + $0x130] sm:$0xff]
    %v1522 = vld [vmem:[#allocation14 + $0x138] sm:$0xff]
    %v1523 = vld [vmem:[#allocation14 + $0x140] sm:$0xff]
    %v1524 = vld [vmem:[#allocation14 + $0x148] sm:$0xff]
    %v1525 = vld [vmem:[#allocation14 + $0x150] sm:$0xff]
    %v1526 = vld [vmem:[#allocation14 + $0x158] sm:$0xff]
    %v1527 = vld [vmem:[#allocation14 + $0x160] sm:$0xff]
    %v1528 = vld [vmem:[#allocation14 + $0x168] sm:$0xff]
    %v1529 = vld [vmem:[#allocation14 + $0x170] sm:$0xff]
    %v1530 = vld [vmem:[#allocation14 + $0x178] sm:$0xff]
    %v1579 = vunpack.c.l.b16 %v1483
    %v1580 = vunpack.c.h.b16 %v1483
    %v1581 = vunpack.c.l.b16 %v1484
    %v1582 = vunpack.c.h.b16 %v1484
    %v1583 = vunpack.c.l.b16 %v1485
    %v1584 = vunpack.c.h.b16 %v1485
    %v1585 = vunpack.c.l.b16 %v1486
    %v1586 = vunpack.c.h.b16 %v1486
    %v1587 = vunpack.c.l.b16 %v1487
    %v1588 = vunpack.c.h.b16 %v1487
    %v1589 = vunpack.c.l.b16 %v1488
    %v1590 = vunpack.c.h.b16 %v1488
    %v1591 = vunpack.c.l.b16 %v1489
    %v1592 = vunpack.c.h.b16 %v1489
    %v1593 = vunpack.c.l.b16 %v1490
    %v1594 = vunpack.c.h.b16 %v1490
    %v1595 = vunpack.c.l.b16 %v1491
    %v1596 = vunpack.c.h.b16 %v1491
    %v1597 = vunpack.c.l.b16 %v1492
    %v1598 = vunpack.c.h.b16 %v1492
    %v1599 = vunpack.c.l.b16 %v1493
    %v1600 = vunpack.c.h.b16 %v1493
    %v1601 = vunpack.c.l.b16 %v1494
    %v1602 = vunpack.c.h.b16 %v1494
    %v1603 = vunpack.c.l.b16 %v1495
    %v1604 = vunpack.c.h.b16 %v1495
    %v1605 = vunpack.c.l.b16 %v1496
    %v1606 = vunpack.c.h.b16 %v1496
    %v1607 = vunpack.c.l.b16 %v1497
    %v1608 = vunpack.c.h.b16 %v1497
    %v1609 = vunpack.c.l.b16 %v1498
    %v1610 = vunpack.c.h.b16 %v1498
    %v1611 = vunpack.c.l.b16 %v1499
    %v1612 = vunpack.c.h.b16 %v1499
    %v1613 = vunpack.c.l.b16 %v1500
    %v1614 = vunpack.c.h.b16 %v1500
    %v1615 = vunpack.c.l.b16 %v1501
    %v1616 = vunpack.c.h.b16 %v1501
    %v1617 = vunpack.c.l.b16 %v1502
    %v1618 = vunpack.c.h.b16 %v1502
    %v1619 = vunpack.c.l.b16 %v1503
    %v1620 = vunpack.c.h.b16 %v1503
    %v1621 = vunpack.c.l.b16 %v1504
    %v1622 = vunpack.c.h.b16 %v1504
    %v1623 = vunpack.c.l.b16 %v1505
    %v1624 = vunpack.c.h.b16 %v1505
    %v1625 = vunpack.c.l.b16 %v1506
    %v1626 = vunpack.c.h.b16 %v1506
    %v1627 = vunpack.c.l.b16 %v1507
    %v1628 = vunpack.c.h.b16 %v1507
    %v1629 = vunpack.c.l.b16 %v1508
    %v1630 = vunpack.c.h.b16 %v1508
    %v1631 = vunpack.c.l.b16 %v1509
    %v1632 = vunpack.c.h.b16 %v1509
    %v1633 = vunpack.c.l.b16 %v1510
    %v1634 = vunpack.c.h.b16 %v1510
    %v1635 = vunpack.c.l.b16 %v1511
    %v1636 = vunpack.c.h.b16 %v1511
    %v1637 = vunpack.c.l.b16 %v1512
    %v1638 = vunpack.c.h.b16 %v1512
    %v1639 = vunpack.c.l.b16 %v1513
    %v1640 = vunpack.c.h.b16 %v1513
    %v1641 = vunpack.c.l.b16 %v1514
    %v1642 = vunpack.c.h.b16 %v1514
    %v1643 = vunpack.c.l.b16 %v1515
    %v1644 = vunpack.c.h.b16 %v1515
    %v1645 = vunpack.c.l.b16 %v1516
    %v1646 = vunpack.c.h.b16 %v1516
    %v1647 = vunpack.c.l.b16 %v1517
    %v1648 = vunpack.c.h.b16 %v1517
    %v1649 = vunpack.c.l.b16 %v1518
    %v1650 = vunpack.c.h.b16 %v1518
    %v1651 = vunpack.c.l.b16 %v1519
    %v1652 = vunpack.c.h.b16 %v1519
    %v1653 = vunpack.c.l.b16 %v1520
    %v1654 = vunpack.c.h.b16 %v1520
    %v1655 = vunpack.c.l.b16 %v1521
    %v1656 = vunpack.c.h.b16 %v1521
    %v1657 = vunpack.c.l.b16 %v1522
    %v1658 = vunpack.c.h.b16 %v1522
    %v1659 = vunpack.c.l.b16 %v1523
    %v1660 = vunpack.c.h.b16 %v1523
    %v1661 = vunpack.c.l.b16 %v1524
    %v1662 = vunpack.c.h.b16 %v1524
    %v1663 = vunpack.c.l.b16 %v1525
    %v1664 = vunpack.c.h.b16 %v1525
    %v1665 = vunpack.c.l.b16 %v1526
    %v1666 = vunpack.c.h.b16 %v1526
    %v1667 = vunpack.c.l.b16 %v1527
    %v1668 = vunpack.c.h.b16 %v1527
    %v1669 = vunpack.c.l.b16 %v1528
    %v1670 = vunpack.c.h.b16 %v1528
    %v1671 = vunpack.c.l.b16 %v1529
    %v1672 = vunpack.c.h.b16 %v1529
    %v1673 = vunpack.c.l.b16 %v1530
    %v1674 = vunpack.c.h.b16 %v1530
    %v1675 = vpack.c.b16 %v1585, %v1579
    %v1676 = vpack.c.b16 %v1586, %v1580
    %v1677 = vpack.c.b16 %v1587, %v1581
    %v1678 = vpack.c.b16 %v1588, %v1582
    %v1679 = vpack.c.b16 %v1589, %v1583
    %v1680 = vpack.c.b16 %v1590, %v1584
    %v1681 = vpack.c.b16 %v1597, %v1591
    %v1682 = vpack.c.b16 %v1598, %v1592
    %v1683 = vpack.c.b16 %v1599, %v1593
    %v1684 = vpack.c.b16 %v1600, %v1594
    %v1685 = vpack.c.b16 %v1601, %v1595
    %v1686 = vpack.c.b16 %v1602, %v1596
    %v1687 = vpack.c.b16 %v1609, %v1603
    %v1688 = vpack.c.b16 %v1610, %v1604
    %v1689 = vpack.c.b16 %v1611, %v1605
    %v1690 = vpack.c.b16 %v1612, %v1606
    %v1691 = vpack.c.b16 %v1613, %v1607
    %v1692 = vpack.c.b16 %v1614, %v1608
    %v1693 = vpack.c.b16 %v1621, %v1615
    %v1694 = vpack.c.b16 %v1622, %v1616
    %v1695 = vpack.c.b16 %v1623, %v1617
    %v1696 = vpack.c.b16 %v1624, %v1618
    %v1697 = vpack.c.b16 %v1625, %v1619
    %v1698 = vpack.c.b16 %v1626, %v1620
    %v1699 = vpack.c.b16 %v1633, %v1627
    %v1700 = vpack.c.b16 %v1634, %v1628
    %v1701 = vpack.c.b16 %v1635, %v1629
    %v1702 = vpack.c.b16 %v1636, %v1630
    %v1703 = vpack.c.b16 %v1637, %v1631
    %v1704 = vpack.c.b16 %v1638, %v1632
    %v1705 = vpack.c.b16 %v1645, %v1639
    %v1706 = vpack.c.b16 %v1646, %v1640
    %v1707 = vpack.c.b16 %v1647, %v1641
    %v1708 = vpack.c.b16 %v1648, %v1642
    %v1709 = vpack.c.b16 %v1649, %v1643
    %v1710 = vpack.c.b16 %v1650, %v1644
    %v1711 = vpack.c.b16 %v1657, %v1651
    %v1712 = vpack.c.b16 %v1658, %v1652
    %v1713 = vpack.c.b16 %v1659, %v1653
    %v1714 = vpack.c.b16 %v1660, %v1654
    %v1715 = vpack.c.b16 %v1661, %v1655
    %v1716 = vpack.c.b16 %v1662, %v1656
    %v1717 = vpack.c.b16 %v1669, %v1663
    %v1718 = vpack.c.b16 %v1670, %v1664
    %v1719 = vpack.c.b16 %v1671, %v1665
    %v1720 = vpack.c.b16 %v1672, %v1666
    %v1721 = vpack.c.b16 %v1673, %v1667
    %v1722 = vpack.c.b16 %v1674, %v1668
    %1771 = vmatprep.subr.bf16.mxu0 %v1718
    %1772 = vmatpush1.bf16.msra.mxu0 %v1717
    %1773 = vmatprep.subr.bf16.mxu0 %v1712
    %1774 = vmatpush1.bf16.msra.mxu0 %v1711
    %1775 = vmatprep.subr.bf16.mxu0 %v1706
    %1776 = vmatpush1.bf16.msra.mxu0 %v1705
    %1777 = vmatprep.subr.bf16.mxu0 %v1700
    %1778 = vmatpush1.bf16.msra.mxu0 %v1699
    %1779 = vmatprep.subr.bf16.mxu0 %v1694
    %1780 = vmatpush1.bf16.msra.mxu0 %v1693
    %1781 = vmatprep.subr.bf16.mxu0 %v1688
    %1782 = vmatpush1.bf16.msra.mxu0 %v1687
    %1783 = vmatprep.subr.bf16.mxu0 %v1682
    %1784 = vmatpush1.bf16.msra.mxu0 %v1681
    %1785 = vmatprep.subr.bf16.mxu0 %v1676
    %1786 = vmatpush1.bf16.msra.mxu0 %v1675
    %1787 = vmatprep.subr.bf16.mxu0 0
    %1788 = vmatpush2.bf16.msra.mxu0 0
    %1789 = vmatprep.subr.bf16.mxu0 0
    %1790 = vmatpush2.bf16.msra.mxu0 0
    %1791 = vmatprep.subr.bf16.mxu0 0
    %1792 = vmatpush2.bf16.msra.mxu0 0
    %1793 = vmatprep.subr.bf16.mxu0 0
    %1794 = vmatpush2.bf16.msra.mxu0 0
    %1795 = vmatprep.subr.bf16.mxu0 0
    %1796 = vmatpush2.bf16.msra.mxu0 0
    %1797 = vmatprep.subr.bf16.mxu0 0
    %1798 = vmatpush2.bf16.msra.mxu0 0
    %1799 = vmatprep.subr.bf16.mxu0 0
    %1800 = vmatpush2.bf16.msra.mxu0 0
    %1801 = vmatprep.subr.bf16.mxu0 0
    %1802 = vmatpush2.bf16.msra.mxu0 0
    %1803 = vmatprep.mubr.bf16.mxu0 0
    %1804 = vmatmul.mubr.bf16.gmra.mxu0 %v1481
    %v1805 = vpop.f32.mrf.mxu0
    %v1806 = vadd.f32 0.0, %v1805
    %v1807 = vpop.f32.mrf.mxu0
    %v1808 = vadd.f32 0.0, %v1807
    %v1809 = vpop.f32.mrf.mxu0
    %v1810 = vadd.f32 0.0, %v1809
    %v1811 = vpop.f32.mrf.mxu0
    %v1812 = vadd.f32 0.0, %v1811
    %1813 = vmatprep.mubr.bf16.mxu0 0
    %1814 = vmatmul.mubr.bf16.gmra.mxu0 %v1482
    %v1815 = vpop.f32.mrf.mxu0
    %v1816 = vadd.f32 0.0, %v1815
    %v1817 = vpop.f32.mrf.mxu0
    %v1818 = vadd.f32 0.0, %v1817
    %v1819 = vpop.f32.mrf.mxu0
    %v1820 = vadd.f32 0.0, %v1819
    %v1821 = vpop.f32.mrf.mxu0
    %v1822 = vadd.f32 0.0, %v1821
    %1823 = vdwg.mxu0
    %1824 = vmatprep.subr.bf16.mxu0 %v1720
    %1825 = vmatpush1.bf16.msra.mxu0 %v1719
    %1826 = vmatprep.subr.bf16.mxu0 %v1714
    %1827 = vmatpush1.bf16.msra.mxu0 %v1713
    %1828 = vmatprep.subr.bf16.mxu0 %v1708
    %1829 = vmatpush1.bf16.msra.mxu0 %v1707
    %1830 = vmatprep.subr.bf16.mxu0 %v1702
    %1831 = vmatpush1.bf16.msra.mxu0 %v1701
    %1832 = vmatprep.subr.bf16.mxu0 %v1696
    %1833 = vmatpush1.bf16.msra.mxu0 %v1695
    %1834 = vmatprep.subr.bf16.mxu0 %v1690
    %1835 = vmatpush1.bf16.msra.mxu0 %v1689
    %1836 = vmatprep.subr.bf16.mxu0 %v1684
    %1837 = vmatpush1.bf16.msra.mxu0 %v1683
    %1838 = vmatprep.subr.bf16.mxu0 %v1678
    %1839 = vmatpush1.bf16.msra.mxu0 %v1677
    %1840 = vmatprep.subr.bf16.mxu0 0
    %1841 = vmatpush2.bf16.msra.mxu0 0
    %1842 = vmatprep.subr.bf16.mxu0 0
    %1843 = vmatpush2.bf16.msra.mxu0 0
    %1844 = vmatprep.subr.bf16.mxu0 0
    %1845 = vmatpush2.bf16.msra.mxu0 0
    %1846 = vmatprep.subr.bf16.mxu0 0
    %1847 = vmatpush2.bf16.msra.mxu0 0
    %1848 = vmatprep.subr.bf16.mxu0 0
    %1849 = vmatpush2.bf16.msra.mxu0 0
    %1850 = vmatprep.subr.bf16.mxu0 0
    %1851 = vmatpush2.bf16.msra.mxu0 0
    %1852 = vmatprep.subr.bf16.mxu0 0
    %1853 = vmatpush2.bf16.msra.mxu0 0
    %1854 = vmatprep.subr.bf16.mxu0 0
    %1855 = vmatpush2.bf16.msra.mxu0 0
    %1856 = vmatprep.mubr.bf16.mxu0 0
    %1857 = vmatmul.mubr.bf16.gmra.mxu0 %v1481
    %v1858 = vpop.f32.mrf.mxu0
    %v1859 = vadd.f32 0.0, %v1858
    %v1860 = vpop.f32.mrf.mxu0
    %v1861 = vadd.f32 0.0, %v1860
    %v1862 = vpop.f32.mrf.mxu0
    %v1863 = vadd.f32 0.0, %v1862
    %v1864 = vpop.f32.mrf.mxu0
    %v1865 = vadd.f32 0.0, %v1864
    %1866 = vmatprep.mubr.bf16.mxu0 0
    %1867 = vmatmul.mubr.bf16.gmra.mxu0 %v1482
    %v1868 = vpop.f32.mrf.mxu0
    %v1869 = vadd.f32 0.0, %v1868
    %v1870 = vpop.f32.mrf.mxu0
    %v1871 = vadd.f32 0.0, %v1870
    %v1872 = vpop.f32.mrf.mxu0
    %v1873 = vadd.f32 0.0, %v1872
    %v1874 = vpop.f32.mrf.mxu0
    %v1875 = vadd.f32 0.0, %v1874
    %1876 = vdwg.mxu0
    %1877 = vmatprep.subr.bf16.mxu0 %v1722
    %1878 = vmatpush1.bf16.msra.mxu0 %v1721
    %1879 = vmatprep.subr.bf16.mxu0 %v1716
    %1880 = vmatpush1.bf16.msra.mxu0 %v1715
    %1881 = vmatprep.subr.bf16.mxu0 %v1710
    %1882 = vmatpush1.bf16.msra.mxu0 %v1709
    %1883 = vmatprep.subr.bf16.mxu0 %v1704
    %1884 = vmatpush1.bf16.msra.mxu0 %v1703
    %1885 = vmatprep.subr.bf16.mxu0 %v1698
    %1886 = vmatpush1.bf16.msra.mxu0 %v1697
    %1887 = vmatprep.subr.bf16.mxu0 %v1692
    %1888 = vmatpush1.bf16.msra.mxu0 %v1691
    %1889 = vmatprep.subr.bf16.mxu0 %v1686
    %1890 = vmatpush1.bf16.msra.mxu0 %v1685
    %1891 = vmatprep.subr.bf16.mxu0 %v1680
    %1892 = vmatpush1.bf16.msra.mxu0 %v1679
    %1893 = vmatprep.subr.bf16.mxu0 0
    %1894 = vmatpush2.bf16.msra.mxu0 0
    %1895 = vmatprep.subr.bf16.mxu0 0
    %1896 = vmatpush2.bf16.msra.mxu0 0
    %1897 = vmatprep.subr.bf16.mxu0 0
    %1898 = vmatpush2.bf16.msra.mxu0 0
    %1899 = vmatprep.subr.bf16.mxu0 0
    %1900 = vmatpush2.bf16.msra.mxu0 0
    %1901 = vmatprep.subr.bf16.mxu0 0
    %1902 = vmatpush2.bf16.msra.mxu0 0
    %1903 = vmatprep.subr.bf16.mxu0 0
    %1904 = vmatpush2.bf16.msra.mxu0 0
    %1905 = vmatprep.subr.bf16.mxu0 0
    %1906 = vmatpush2.bf16.msra.mxu0 0
    %1907 = vmatprep.subr.bf16.mxu0 0
    %1908 = vmatpush2.bf16.msra.mxu0 0
    %1909 = vmatprep.mubr.bf16.mxu0 0
    %1910 = vmatmul.mubr.bf16.gmra.mxu0 %v1481
    %v1911 = vpop.f32.mrf.mxu0
    %v1912 = vadd.f32 0.0, %v1911
    %v1913 = vpop.f32.mrf.mxu0
    %v1914 = vadd.f32 0.0, %v1913
    %v1915 = vpop.f32.mrf.mxu0
    %v1916 = vadd.f32 0.0, %v1915
    %v1917 = vpop.f32.mrf.mxu0
    %v1918 = vadd.f32 0.0, %v1917
    %1919 = vmatprep.mubr.bf16.mxu0 0
    %1920 = vmatmul.mubr.bf16.gmra.mxu0 %v1482
    %v1921 = vpop.f32.mrf.mxu0
    %v1922 = vadd.f32 0.0, %v1921
    %v1923 = vpop.f32.mrf.mxu0
    %v1924 = vadd.f32 0.0, %v1923
    %v1925 = vpop.f32.mrf.mxu0
    %v1926 = vadd.f32 0.0, %v1925
    %v1927 = vpop.f32.mrf.mxu0
    %v1928 = vadd.f32 0.0, %v1927
    %1929 = vdwg.mxu0
    %v1930 = vxor.u32 %v1806, 2147483648
    %v1931 = vxor.u32 %v1808, 2147483648
    %v1932 = vxor.u32 %v1859, 2147483648
    %v1933 = vxor.u32 %v1810, 2147483648
    %v1934 = vxor.u32 %v1812, 2147483648
    %v1935 = vxor.u32 %v1863, 2147483648
    %v1936 = vxor.u32 %v1816, 2147483648
    %v1937 = vxor.u32 %v1818, 2147483648
    %v1938 = vxor.u32 %v1869, 2147483648
    %v1939 = vxor.u32 %v1820, 2147483648
    %v1940 = vxor.u32 %v1822, 2147483648
    %v1941 = vxor.u32 %v1873, 2147483648
    %v1942 = vmul.f32 %v1930, 1.442695
    %v1943 = vpow.pop %v1942
    %v1944 = vmul.f32 %v1931, 1.442695
    %v1945 = vpow.pop %v1944
    %v1946 = vmul.f32 %v1932, 1.442695
    %v1947 = vpow.pop %v1946
    %v1948 = vmul.f32 %v1933, 1.442695
    %v1949 = vpow.pop %v1948
    %v1950 = vmul.f32 %v1934, 1.442695
    %v1951 = vpow.pop %v1950
    %v1952 = vmul.f32 %v1935, 1.442695
    %v1953 = vpow.pop %v1952
    %v1954 = vmul.f32 %v1936, 1.442695
    %v1955 = vpow.pop %v1954
    %v1956 = vmul.f32 %v1937, 1.442695
    %v1957 = vpow.pop %v1956
    %v1958 = vmul.f32 %v1938, 1.442695
    %v1959 = vpow.pop %v1958
    %v1960 = vmul.f32 %v1939, 1.442695
    %v1961 = vpow.pop %v1960
    %v1962 = vmul.f32 %v1940, 1.442695
    %v1963 = vpow.pop %v1962
    %v1964 = vmul.f32 %v1941, 1.442695
    %v1965 = vpow.pop %v1964
    %v1966 = vadd.f32 %v1943, 1.0
    %v1967 = vadd.f32 %v1945, 1.0
    %v1968 = vadd.f32 %v1947, 1.0
    %v1969 = vadd.f32 %v1949, 1.0
    %v1970 = vadd.f32 %v1951, 1.0
    %v1971 = vadd.f32 %v1953, 1.0
    %v1972 = vadd.f32 %v1955, 1.0
    %v1973 = vadd.f32 %v1957, 1.0
    %v1974 = vadd.f32 %v1959, 1.0
    %v1975 = vadd.f32 %v1961, 1.0
    %v1976 = vadd.f32 %v1963, 1.0
    %v1977 = vadd.f32 %v1965, 1.0
    %v1978 = vrcp.pop %v1966
    %v1979 = vmul.f32 1.0, %v1978
    %v1980 = vrcp.pop %v1967
    %v1981 = vmul.f32 1.0, %v1980
    %v1982 = vrcp.pop %v1968
    %v1983 = vmul.f32 1.0, %v1982
    %v1984 = vrcp.pop %v1969
    %v1985 = vmul.f32 1.0, %v1984
    %v1986 = vrcp.pop %v1970
    %v1987 = vmul.f32 1.0, %v1986
    %v1988 = vrcp.pop %v1971
    %v1989 = vmul.f32 1.0, %v1988
    %v1990 = vrcp.pop %v1972
    %v1991 = vmul.f32 1.0, %v1990
    %v1992 = vrcp.pop %v1973
    %v1993 = vmul.f32 1.0, %v1992
    %v1994 = vrcp.pop %v1974
    %v1995 = vmul.f32 1.0, %v1994
    %v1996 = vrcp.pop %v1975
    %v1997 = vmul.f32 1.0, %v1996
    %v1998 = vrcp.pop %v1976
    %v1999 = vmul.f32 1.0, %v1998
    %v2000 = vrcp.pop %v1977
    %v2001 = vmul.f32 1.0, %v2000
    %v2002 = vmul.f32 %v1806, %v1979
    %v2003 = vmul.f32 %v1808, %v1981
    %v2004 = vmul.f32 %v1859, %v1983
    %v2005 = vmul.f32 %v1810, %v1985
    %v2006 = vmul.f32 %v1812, %v1987
    %v2007 = vmul.f32 %v1863, %v1989
    %v2008 = vmul.f32 %v1816, %v1991
    %v2009 = vmul.f32 %v1818, %v1993
    %v2010 = vmul.f32 %v1869, %v1995
    %v2011 = vmul.f32 %v1820, %v1997
    %v2012 = vmul.f32 %v1822, %v1999
    %v2013 = vmul.f32 %v1873, %v2001
    %v2014 = vmul.f32 %v2002, %v1861
    %v2015 = vmul.f32 %v2003, %v1912
    %v2016 = vmul.f32 %v2004, %v1914
    %v2017 = vmul.f32 %v2005, %v1865
    %v2018 = vmul.f32 %v2006, %v1916
    %v2019 = vmul.f32 %v2007, %v1918
    %v2020 = vmul.f32 %v2008, %v1871
    %v2021 = vmul.f32 %v2009, %v1922
    %v2022 = vmul.f32 %v2010, %v1924
    %v2023 = vmul.f32 %v2011, %v1875
    %v2024 = vmul.f32 %v2012, %v1926
    %v2025 = vmul.f32 %v2013, %v1928
    %v2026 = vpack.c.bf16 %v2017, %v2014
    %v2027 = vpack.c.bf16 %v2018, %v2015
    %v2028 = vpack.c.bf16 %v2019, %v2016
    %v2029 = vpack.c.bf16 %v2023, %v2020
    %v2030 = vpack.c.bf16 %v2024, %v2021
    %v2031 = vpack.c.bf16 %v2025, %v2022
    %v2032 = vld [vmem:[#allocation16] sm:$0xf]
    %v2033 = vld [vmem:[#allocation16 + $0x4] sm:$0xf]
    %v2034 = vld [vmem:[#allocation16 + $0x8] sm:$0xf]
    %v2035 = vld [vmem:[#allocation16 + $0xc] sm:$0xf]
    %v2036 = vld [vmem:[#allocation16 + $0x10] sm:$0xf]
    %v2037 = vld [vmem:[#allocation16 + $0x14] sm:$0xf]
    %v2038 = vld [vmem:[#allocation16 + $0x18] sm:$0xf]
    %v2039 = vld [vmem:[#allocation16 + $0x1c] sm:$0xf]
    %v2040 = vld [vmem:[#allocation16 + $0x20] sm:$0xf]
    %v2041 = vld [vmem:[#allocation16 + $0x24] sm:$0xf]
    %v2042 = vld [vmem:[#allocation16 + $0x28] sm:$0xf]
    %v2043 = vld [vmem:[#allocation16 + $0x2c] sm:$0xf]
    %v2044 = vld [vmem:[#allocation16 + $0x30] sm:$0xf]
    %v2045 = vld [vmem:[#allocation16 + $0x34] sm:$0xf]
    %v2046 = vld [vmem:[#allocation16 + $0x38] sm:$0xf]
    %v2047 = vld [vmem:[#allocation16 + $0x3c] sm:$0xf]
    %v2048 = vld [vmem:[#allocation16 + $0x40] sm:$0xf]
    %v2049 = vld [vmem:[#allocation16 + $0x44] sm:$0xf]
    %v2050 = vld [vmem:[#allocation16 + $0x48] sm:$0xf]
    %v2051 = vld [vmem:[#allocation16 + $0x4c] sm:$0xf]
    %v2052 = vld [vmem:[#allocation16 + $0x50] sm:$0xf]
    %v2053 = vld [vmem:[#allocation16 + $0x54] sm:$0xf]
    %v2054 = vld [vmem:[#allocation16 + $0x58] sm:$0xf]
    %v2055 = vld [vmem:[#allocation16 + $0x5c] sm:$0xf]
    %v2056 = vld [vmem:[#allocation16 + $0x60] sm:$0xf]
    %v2057 = vld [vmem:[#allocation16 + $0x64] sm:$0xf]
    %v2058 = vld [vmem:[#allocation16 + $0x68] sm:$0xf]
    %v2059 = vld [vmem:[#allocation16 + $0x6c] sm:$0xf]
    %v2060 = vld [vmem:[#allocation16 + $0x70] sm:$0xf]
    %v2061 = vld [vmem:[#allocation16 + $0x74] sm:$0xf]
    %v2062 = vld [vmem:[#allocation16 + $0x78] sm:$0xf]
    %v2063 = vld [vmem:[#allocation16 + $0x7c] sm:$0xf]
    %v2064 = vld [vmem:[#allocation16 + $0x80] sm:$0xf]
    %v2065 = vld [vmem:[#allocation16 + $0x84] sm:$0xf]
    %v2066 = vld [vmem:[#allocation16 + $0x88] sm:$0xf]
    %v2067 = vld [vmem:[#allocation16 + $0x8c] sm:$0xf]
    %v2068 = vld [vmem:[#allocation16 + $0x90] sm:$0xf]
    %v2069 = vld [vmem:[#allocation16 + $0x94] sm:$0xf]
    %v2070 = vld [vmem:[#allocation16 + $0x98] sm:$0xf]
    %v2071 = vld [vmem:[#allocation16 + $0x9c] sm:$0xf]
    %v2072 = vld [vmem:[#allocation16 + $0xa0] sm:$0xf]
    %v2073 = vld [vmem:[#allocation16 + $0xa4] sm:$0xf]
    %v2074 = vld [vmem:[#allocation16 + $0xa8] sm:$0xf]
    %v2075 = vld [vmem:[#allocation16 + $0xac] sm:$0xf]
    %v2076 = vld [vmem:[#allocation16 + $0xb0] sm:$0xf]
    %v2077 = vld [vmem:[#allocation16 + $0xb4] sm:$0xf]
    %v2078 = vld [vmem:[#allocation16 + $0xb8] sm:$0xf]
    %v2079 = vld [vmem:[#allocation16 + $0xbc] sm:$0xf]
    %v2128 = vunpack.c.l.b16 %v2032
    %v2129 = vunpack.c.l.b16 %v2033
    %v2130 = vunpack.c.l.b16 %v2034
    %v2131 = vunpack.c.l.b16 %v2035
    %v2132 = vunpack.c.l.b16 %v2036
    %v2133 = vunpack.c.l.b16 %v2037
    %v2134 = vunpack.c.l.b16 %v2038
    %v2135 = vunpack.c.l.b16 %v2039
    %v2136 = vunpack.c.l.b16 %v2040
    %v2137 = vunpack.c.l.b16 %v2041
    %v2138 = vunpack.c.l.b16 %v2042
    %v2139 = vunpack.c.l.b16 %v2043
    %v2140 = vunpack.c.l.b16 %v2044
    %v2141 = vunpack.c.l.b16 %v2045
    %v2142 = vunpack.c.l.b16 %v2046
    %v2143 = vunpack.c.l.b16 %v2047
    %v2144 = vunpack.c.l.b16 %v2048
    %v2145 = vunpack.c.l.b16 %v2049
    %v2146 = vunpack.c.l.b16 %v2050
    %v2147 = vunpack.c.l.b16 %v2051
    %v2148 = vunpack.c.l.b16 %v2052
    %v2149 = vunpack.c.l.b16 %v2053
    %v2150 = vunpack.c.l.b16 %v2054
    %v2151 = vunpack.c.l.b16 %v2055
    %v2152 = vunpack.c.l.b16 %v2056
    %v2153 = vunpack.c.l.b16 %v2057
    %v2154 = vunpack.c.l.b16 %v2058
    %v2155 = vunpack.c.l.b16 %v2059
    %v2156 = vunpack.c.l.b16 %v2060
    %v2157 = vunpack.c.l.b16 %v2061
    %v2158 = vunpack.c.l.b16 %v2062
    %v2159 = vunpack.c.l.b16 %v2063
    %v2160 = vunpack.c.l.b16 %v2064
    %v2161 = vunpack.c.l.b16 %v2065
    %v2162 = vunpack.c.l.b16 %v2066
    %v2163 = vunpack.c.l.b16 %v2067
    %v2164 = vunpack.c.l.b16 %v2068
    %v2165 = vunpack.c.l.b16 %v2069
    %v2166 = vunpack.c.l.b16 %v2070
    %v2167 = vunpack.c.l.b16 %v2071
    %v2168 = vunpack.c.l.b16 %v2072
    %v2169 = vunpack.c.l.b16 %v2073
    %v2170 = vunpack.c.l.b16 %v2074
    %v2171 = vunpack.c.l.b16 %v2075
    %v2172 = vunpack.c.l.b16 %v2076
    %v2173 = vunpack.c.l.b16 %v2077
    %v2174 = vunpack.c.l.b16 %v2078
    %v2175 = vunpack.c.l.b16 %v2079
    %v2176 = vpack.c.b16 %v2129, %v2128
    %v2177 = vpack.c.b16 %v2131, %v2130
    %v2178 = vpack.c.b16 %v2133, %v2132
    %v2179 = vpack.c.b16 %v2135, %v2134
    %v2180 = vpack.c.b16 %v2137, %v2136
    %v2181 = vpack.c.b16 %v2139, %v2138
    %v2182 = vpack.c.b16 %v2141, %v2140
    %v2183 = vpack.c.b16 %v2143, %v2142
    %v2184 = vpack.c.b16 %v2145, %v2144
    %v2185 = vpack.c.b16 %v2147, %v2146
    %v2186 = vpack.c.b16 %v2149, %v2148
    %v2187 = vpack.c.b16 %v2151, %v2150
    %v2188 = vpack.c.b16 %v2153, %v2152
    %v2189 = vpack.c.b16 %v2155, %v2154
    %v2190 = vpack.c.b16 %v2157, %v2156
    %v2191 = vpack.c.b16 %v2159, %v2158
    %v2192 = vpack.c.b16 %v2161, %v2160
    %v2193 = vpack.c.b16 %v2163, %v2162
    %v2194 = vpack.c.b16 %v2165, %v2164
    %v2195 = vpack.c.b16 %v2167, %v2166
    %v2196 = vpack.c.b16 %v2169, %v2168
    %v2197 = vpack.c.b16 %v2171, %v2170
    %v2198 = vpack.c.b16 %v2173, %v2172
    %v2199 = vpack.c.b16 %v2175, %v2174
    %2224 = vmatprep.subr.bf16.mxu0 0
    %2225 = vmatpush1.bf16.msra.mxu0 %v2183
    %2226 = vmatprep.subr.bf16.mxu0 0
    %2227 = vmatpush1.bf16.msra.mxu0 %v2182
    %2228 = vmatprep.subr.bf16.mxu0 0
    %2229 = vmatpush1.bf16.msra.mxu0 %v2181
    %2230 = vmatprep.subr.bf16.mxu0 0
    %2231 = vmatpush1.bf16.msra.mxu0 %v2180
    %2232 = vmatprep.subr.bf16.mxu0 0
    %2233 = vmatpush1.bf16.msra.mxu0 %v2179
    %2234 = vmatprep.subr.bf16.mxu0 0
    %2235 = vmatpush1.bf16.msra.mxu0 %v2178
    %2236 = vmatprep.subr.bf16.mxu0 0
    %2237 = vmatpush1.bf16.msra.mxu0 %v2177
    %2238 = vmatprep.subr.bf16.mxu0 0
    %2239 = vmatpush1.bf16.msra.mxu0 %v2176
    %2240 = vmatprep.subr.bf16.mxu0 0
    %2241 = vmatpush2.bf16.msra.mxu0 %v2191
    %2242 = vmatprep.subr.bf16.mxu0 0
    %2243 = vmatpush2.bf16.msra.mxu0 %v2190
    %2244 = vmatprep.subr.bf16.mxu0 0
    %2245 = vmatpush2.bf16.msra.mxu0 %v2189
    %2246 = vmatprep.subr.bf16.mxu0 0
    %2247 = vmatpush2.bf16.msra.mxu0 %v2188
    %2248 = vmatprep.subr.bf16.mxu0 0
    %2249 = vmatpush2.bf16.msra.mxu0 %v2187
    %2250 = vmatprep.subr.bf16.mxu0 0
    %2251 = vmatpush2.bf16.msra.mxu0 %v2186
    %2252 = vmatprep.subr.bf16.mxu0 0
    %2253 = vmatpush2.bf16.msra.mxu0 %v2185
    %2254 = vmatprep.subr.bf16.mxu0 0
    %2255 = vmatpush2.bf16.msra.mxu0 %v2184
    %2256 = vmatprep.mubr.bf16.mxu0 %v2027
    %2257 = vmatmul.mubr.bf16.gmra.mxu0 %v2026
    %v2258 = vpop.f32.mrf.mxu0
    %v2259 = vadd.f32 0.0, %v2258
    %v2260 = vpop.f32.mrf.mxu0
    %v2261 = vpop.f32.mrf.mxu0
    %v2262 = vadd.f32 0.0, %v2261
    %v2263 = vpop.f32.mrf.mxu0
    %2264 = vmatprep.mubr.bf16.mxu0 %v2030
    %2265 = vmatmul.mubr.bf16.gmra.mxu0 %v2029
    %v2266 = vpop.f32.mrf.mxu0
    %v2267 = vadd.f32 0.0, %v2266
    %v2268 = vpop.f32.mrf.mxu0
    %v2269 = vpop.f32.mrf.mxu0
    %v2270 = vadd.f32 0.0, %v2269
    %v2271 = vpop.f32.mrf.mxu0
    %2272 = vdwg.mxu0
    %2273 = vmatprep.subr.bf16.mxu0 0
    %2274 = vmatpush1.bf16.msra.mxu0 %v2199
    %2275 = vmatprep.subr.bf16.mxu0 0
    %2276 = vmatpush1.bf16.msra.mxu0 %v2198
    %2277 = vmatprep.subr.bf16.mxu0 0
    %2278 = vmatpush1.bf16.msra.mxu0 %v2197
    %2279 = vmatprep.subr.bf16.mxu0 0
    %2280 = vmatpush1.bf16.msra.mxu0 %v2196
    %2281 = vmatprep.subr.bf16.mxu0 0
    %2282 = vmatpush1.bf16.msra.mxu0 %v2195
    %2283 = vmatprep.subr.bf16.mxu0 0
    %2284 = vmatpush1.bf16.msra.mxu0 %v2194
    %2285 = vmatprep.subr.bf16.mxu0 0
    %2286 = vmatpush1.bf16.msra.mxu0 %v2193
    %2287 = vmatprep.subr.bf16.mxu0 0
    %2288 = vmatpush1.bf16.msra.mxu0 %v2192
    %2289 = vmatprep.subr.bf16.mxu0 0
    %2290 = vmatpush2.bf16.msra.mxu0 0
    %2291 = vmatprep.subr.bf16.mxu0 0
    %2292 = vmatpush2.bf16.msra.mxu0 0
    %2293 = vmatprep.subr.bf16.mxu0 0
    %2294 = vmatpush2.bf16.msra.mxu0 0
    %2295 = vmatprep.subr.bf16.mxu0 0
    %2296 = vmatpush2.bf16.msra.mxu0 0
    %2297 = vmatprep.subr.bf16.mxu0 0
    %2298 = vmatpush2.bf16.msra.mxu0 0
    %2299 = vmatprep.subr.bf16.mxu0 0
    %2300 = vmatpush2.bf16.msra.mxu0 0
    %2301 = vmatprep.subr.bf16.mxu0 0
    %2302 = vmatpush2.bf16.msra.mxu0 0
    %2303 = vmatprep.subr.bf16.mxu0 0
    %2304 = vmatpush2.bf16.msra.mxu0 0
    %2305 = vmatprep.mubr.bf16.mxu0 0
    %2306 = vmatmul.mubr.bf16.gmra.mxu0 %v2028
    %v2307 = vpop.f32.mrf.mxu0
    %v2308 = vadd.f32 %v2259, %v2307
    %v2309 = vpop.f32.mrf.mxu0
    %v2310 = vpop.f32.mrf.mxu0
    %v2311 = vadd.f32 %v2262, %v2310
    %v2312 = vpop.f32.mrf.mxu0
    %2313 = vmatprep.mubr.bf16.mxu0 0
    %2314 = vmatmul.mubr.bf16.gmra.mxu0 %v2031
    %v2315 = vpop.f32.mrf.mxu0
    %v2316 = vadd.f32 %v2267, %v2315
    %v2317 = vpop.f32.mrf.mxu0
    %v2318 = vpop.f32.mrf.mxu0
    %v2319 = vadd.f32 %v2270, %v2318
    %v2320 = vpop.f32.mrf.mxu0
    %2321 = vdwg.mxu0
    %v2322 = vadd.f32 %v1438, %v2308
    %v2323 = vadd.f32 %v1439, %v2311
    %v2324 = vadd.f32 %v1440, %v2316
    %v2325 = vadd.f32 %v1441, %v2319
    %2326 = vst [vmem:[#allocation17] sm:$0xff] %v2322
    %2327 = vst [vmem:[#allocation17 + $0x8] sm:$0xff] %v2323
    %2328 = vst [vmem:[#allocation17 + $0x10] sm:$0xff] %v2324
    %2329 = vst [vmem:[#allocation17 + $0x18] sm:$0xff] %v2325
    // Predicated region
    $region82: #{transformer_block.1} parent=1 // pred_check
      _
    $region83: #{transformer_block.1} parent=1 // pred_check_branch
      %2331 = sbr.rel (0) target = $region85
    $region84: #{transformer_block.1} parent=1 // pred_region
      %s2333 = ssub.s32 512, 512
      %2334 = vsyncadd [#allocation4], %s2333
      %s2335 = sshll.u32 [#allocation17], 4
      %s2336 = int_to_ptr.vmem [resolvable:$true] %s2335
      %2341 = dma.vmem_to_hbm [thread:$0]  %s2336, 512, %s11, [#allocation4], 128, 128, 8
    $region85: #{transformer_block.1} parent=1 // pred_fallthru
      _
    // Predicated region
    $region86: #{transformer_block.1} parent=1 // pred_check
      _
    $region87: #{transformer_block.1} parent=1 // pred_check_branch
      %2343 = sbr.rel (0) target = $region89
    $region88: #{transformer_block.1} parent=1 // pred_region
      %2344 = dma.done [#allocation4], 512
    $region89: #{transformer_block.1} parent=1 // pred_fallthru
      _
    %2345 = vsyncpa [#allocation3], 1
    %2346 = vsyncpa [#allocation6], 1
    %2347 = vsyncpa [#allocation9], 1
    %2348 = vsyncpa [#allocation12], 1
    %2349 = vsyncpa [#allocation15], 1
    %2350 = vsyncpa [#allocation4], 1

</llo_original>
